<compile_context>
chip_gen: v5e
topology: v5e:2x2
jax: 0.10.0
libtpu: 0.0.40
codegen_flags: <defaults>
</compile_context>

<pallas_src>
import functools

import jax
import jax.numpy as jnp
from jax import lax
from jax.experimental import pallas as pl
from jax.experimental.pallas import tpu as pltpu


# ------------------------------ Pallas kernel ------------------------------ #

def _efficient_attention_kernel(
    x_ref,        # (1, C, N)
    wqkv_ref,     # (2*Kc + Vc, C)   rows = [keys | queries | values]
    bqkv_ref,     # (2*Kc + Vc, 1)
    wrp_ref,      # (C, Vc)
    brp_ref,      # (C, 1)
    o_ref,        # (1, C, N)
    *,
    key_channels,
    value_channels,
    head_count,
):
    Kc, Vc = key_channels, value_channels
    hkc = Kc // head_count
    hvc = Vc // head_count

    x = x_ref[0].astype(jnp.float32)                         # (C, N)

    # Fused 1x1-conv projections: one matmul producing keys|queries|values.
    qkv = (
        jnp.dot(wqkv_ref[...], x, preferred_element_type=jnp.float32)
        + bqkv_ref[...]
    )                                                         # (2*Kc+Vc, N)
    keys = qkv[:Kc]                                           # (Kc, N)
    queries = qkv[Kc:2 * Kc]                                  # (Kc, N)
    values = qkv[2 * Kc:]                                     # (Vc, N)

    attended = []
    for i in range(head_count):                               # static unroll
        k = keys[i * hkc:(i + 1) * hkc, :]                    # (hkc, N)
        q = queries[i * hkc:(i + 1) * hkc, :]                 # (hkc, N)
        v = values[i * hvc:(i + 1) * hvc, :]                  # (hvc, N)

        # softmax over spatial (lane axis)
        k = jnp.exp(k - jnp.max(k, axis=1, keepdims=True))
        k = k * pl.reciprocal(jnp.sum(k, axis=1, keepdims=True), approx=False)

        # softmax over channels (sublane axis, hkc rows)
        q = jnp.exp(q - jnp.max(q, axis=0, keepdims=True))
        q = q * pl.reciprocal(jnp.sum(q, axis=0, keepdims=True), approx=False)

        # context = k @ v.T  (NT form, contract over N; no explicit transpose)
        context = lax.dot_general(
            k, v, (((1,), (1,)), ((), ())),
            preferred_element_type=jnp.float32)               # (hkc, hvc)

        # attended = context.T @ q (TN form, contract over hkc; no transpose)
        att = lax.dot_general(
            context, q, (((0,), (0,)), ((), ())),
            preferred_element_type=jnp.float32)               # (hvc, N)
        attended.append(att)

    agg = jnp.concatenate(attended, axis=0)                   # (Vc, N)

    # Reprojection 1x1 conv + residual.
    out = (
        jnp.dot(wrp_ref[...], agg, preferred_element_type=jnp.float32)
        + brp_ref[...]
        + x
    )                                                         # (C, N)
    o_ref[0] = out.astype(o_ref.dtype)


# -------------------------------- Wrapper ----------------------------------- #

def efficient_attention_forward(x, params, *, key_channels, value_channels,
                                head_count):
    """EfficientAttention forward. x: (B, C, H, W) -> (B, C, H, W)."""
    B, C, H, W = x.shape
    N = H * W
    Kc, Vc = key_channels, value_channels
    QKV = 2 * Kc + Vc
    assert Kc % head_count == 0 and Vc % head_count == 0

    x3 = x.reshape(B, C, N)                                   # free (contiguous)

    # Fuse the three projection weights/biases (keys | queries | values).
    wqkv = jnp.concatenate([params["wk"], params["wq"], params["wv"]], axis=0)
    bqkv = jnp.concatenate([params["bk"], params["bq"], params["bv"]],
                           axis=0).reshape(QKV, 1)
    wrp = params["wr"]                                        # (C, Vc)
    brp = params["br"].reshape(C, 1)

    kernel = functools.partial(
        _efficient_attention_kernel,
        key_channels=Kc, value_channels=Vc, head_count=head_count)

    flops_per_batch = (
        2 * QKV * C * N                                   # qkv projection
        + head_count * (2 * (Kc // head_count) * (Vc // head_count) * N) * 2
        + 2 * C * Vc * N                                  # reprojection
    )
    bytes_accessed = (
        2 * B * C * N * 4 + (QKV * C + QKV + C * Vc + C) * 4)
    cost = pl.CostEstimate(
        flops=B * flops_per_batch,
        transcendentals=B * 2 * Kc * N,                   # exp in both softmaxes
        bytes_accessed=bytes_accessed,
    )

    out = pl.pallas_call(
        kernel,
        grid=(B,),
        in_specs=[
            pl.BlockSpec((1, C, N), lambda b: (b, 0, 0)),
            pl.BlockSpec((QKV, C), lambda b: (0, 0)),
            pl.BlockSpec((QKV, 1), lambda b: (0, 0)),
            pl.BlockSpec((C, Vc), lambda b: (0, 0)),
            pl.BlockSpec((C, 1), lambda b: (0, 0)),
        ],
        out_specs=pl.BlockSpec((1, C, N), lambda b: (b, 0, 0)),
        out_shape=jax.ShapeDtypeStruct((B, C, N), x.dtype),
        compiler_params=pltpu.CompilerParams(
            dimension_semantics=("parallel",)),
        cost_estimate=cost,
    )(x3, wqkv, bqkv, wrp, brp)

    return out.reshape(B, C, H, W)


# ---------------------------- Pure-JAX reference ---------------------------- #

def reference_forward(x, params, *, key_channels, value_channels, head_count):
    B, C, H, W = x.shape
    N = H * W
    hi = jax.lax.Precision.HIGHEST
    x3 = x.reshape(B, C, N)
    keys = jnp.einsum("oc,bcn->bon", params["wk"], x3, precision=hi) \
        + params["bk"][None, :, None]
    queries = jnp.einsum("oc,bcn->bon", params["wq"], x3, precision=hi) \
        + params["bq"][None, :, None]
    values = jnp.einsum("oc,bcn->bon", params["wv"], x3, precision=hi) \
        + params["bv"][None, :, None]
    hkc = key_channels // head_count
    hvc = value_channels // head_count
    outs = []
    for i in range(head_count):
        k = jax.nn.softmax(keys[:, i * hkc:(i + 1) * hkc, :], axis=2)
        q = jax.nn.softmax(queries[:, i * hkc:(i + 1) * hkc, :], axis=1)
        v = values[:, i * hvc:(i + 1) * hvc, :]
        context = jnp.einsum("bkn,bvn->bkv", k, v, precision=hi)
        att = jnp.einsum("bkv,bkn->bvn", context, q, precision=hi)
        outs.append(att)
    agg = jnp.concatenate(outs, axis=1)
    rep = jnp.einsum("ov,bvn->bon", params["wr"], agg, precision=hi) \
        + params["br"][None, :, None]
    return (rep + x3).reshape(B, C, H, W)


# --------------------------------- Main ------------------------------------- #

if __name__ == "__main__":
    B, C, H, W = 2, 32, 16, 16          # in_channels=32, N = 256 tokens
    key_channels = 32
    value_channels = 32
    head_count = 4                      # head_key/value_channels = 8

    key = jax.random.PRNGKey(0)
    kx, k1, k2, k3, k4, k5, k6, k7, k8 = jax.random.split(key, 9)

    x = jax.random.normal(kx, (B, C, H, W), dtype=jnp.float32)

    params = {
        # Conv2d(in, out, 1) weights stored as (out, in); y = W @ x + b.
        "wk": 0.05 * jax.random.normal(k1, (key_channels, C), jnp.float32),
        "bk": 0.05 * jax.random.normal(k2, (key_channels,), jnp.float32),
        "wq": 0.05 * jax.random.normal(k3, (key_channels, C), jnp.float32),
        "bq": 0.05 * jax.random.normal(k4, (key_channels,), jnp.float32),
        "wv": 0.05 * jax.random.normal(k5, (value_channels, C), jnp.float32),
        "bv": 0.05 * jax.random.normal(k6, (value_channels,), jnp.float32),
        "wr": 0.05 * jax.random.normal(k7, (C, value_channels), jnp.float32),
        "br": 0.05 * jax.random.normal(k8, (C,), jnp.float32),
    }

    out = efficient_attention_forward(
        x, params, key_channels=key_channels,
        value_channels=value_channels, head_count=head_count)
    out = jax.block_until_ready(out)

    ref = reference_forward(
        x, params, key_channels=key_channels,
        value_channels=value_channels, head_count=head_count)

    assert out.shape == (B, C, H, W), out.shape
    max_err = float(jnp.max(jnp.abs(out - ref)))
    assert jnp.allclose(out, ref, atol=1e-4, rtol=1e-4), max_err
    print("KERNEL_OK")
</pallas_src>

<mosaic_0001>
module attributes {stable_mosaic.version = 11 : i64} {
  func.func @_efficient_attention_kernel(%arg0: i32, %arg1: memref<1x32x256xf32, #tpu.memory_space<vmem>>, %arg2: memref<96x32xf32, #tpu.memory_space<vmem>>, %arg3: memref<96x1xf32, #tpu.memory_space<vmem>>, %arg4: memref<32x32xf32, #tpu.memory_space<vmem>>, %arg5: memref<32x1xf32, #tpu.memory_space<vmem>>, %arg6: memref<1x32x256xf32, #tpu.memory_space<vmem>>) attributes {dimension_semantics = [#tpu.dimension_semantics<parallel>], iteration_bounds = array<i64: 2>, scalar_prefetch = 0 : i64, scratch_operands = 0 : i64, tpu.core_type = #tpu.core_type<tc>, window_params = [{transform_indices = @transform_0, window_bounds = array<i64: 1, 32, 256>}, {pipeline_mode = #tpu.pipeline_mode<synchronous>, transform_indices = @transform_1, window_bounds = array<i64: 96, 32>}, {pipeline_mode = #tpu.pipeline_mode<synchronous>, transform_indices = @transform_2, window_bounds = array<i64: 96, 1>}, {pipeline_mode = #tpu.pipeline_mode<synchronous>, transform_indices = @transform_3, window_bounds = array<i64: 32, 32>}, {pipeline_mode = #tpu.pipeline_mode<synchronous>, transform_indices = @transform_4, window_bounds = array<i64: 32, 1>}, {transform_indices = @transform_5, window_bounds = array<i64: 1, 32, 256>}]} {
    %c0 = arith.constant 0 : index
    %c0_0 = arith.constant 0 : index
    %c0_1 = arith.constant 0 : index
    %0 = vector.load %arg1[%c0, %c0_0, %c0_1] : memref<1x32x256xf32, #tpu.memory_space<vmem>>, vector<1x32x256xf32>
    %1 = vector.shape_cast %0 : vector<1x32x256xf32> to vector<32x256xf32>
    %c0_2 = arith.constant 0 : index
    %c0_3 = arith.constant 0 : index
    %2 = vector.load %arg2[%c0_2, %c0_3] : memref<96x32xf32, #tpu.memory_space<vmem>>, vector<96x32xf32>
    %cst = arith.constant dense<0.000000e+00> : vector<96x256xf32>
    %3 = tpu.matmul %2, %1, %cst {dimension_numbers = #tpu.dot_dimension_numbers<[1], [0], [0], [1], [0, 0, 1, 1], [], []>} : vector<96x32xf32>, vector<32x256xf32>, vector<96x256xf32> -> vector<96x256xf32>
    %c0_4 = arith.constant 0 : index
    %c0_5 = arith.constant 0 : index
    %4 = vector.load %arg3[%c0_4, %c0_5] : memref<96x1xf32, #tpu.memory_space<vmem>>, vector<96x1xf32>
    %5 = vector.broadcast %4 : vector<96x1xf32> to vector<96x256xf32>
    %6 = arith.addf %3, %5 : vector<96x256xf32>
    %7 = vector.extract_strided_slice %6 {offsets = [0, 0], sizes = [32, 256], strides = [1, 1]} : vector<96x256xf32> to vector<32x256xf32>
    %8 = vector.extract_strided_slice %6 {offsets = [32, 0], sizes = [32, 256], strides = [1, 1]} : vector<96x256xf32> to vector<32x256xf32>
    %9 = vector.extract_strided_slice %6 {offsets = [64, 0], sizes = [32, 256], strides = [1, 1]} : vector<96x256xf32> to vector<32x256xf32>
    %10 = vector.extract_strided_slice %7 {offsets = [0, 0], sizes = [8, 256], strides = [1, 1]} : vector<32x256xf32> to vector<8x256xf32>
    %11 = vector.extract_strided_slice %8 {offsets = [0, 0], sizes = [8, 256], strides = [1, 1]} : vector<32x256xf32> to vector<8x256xf32>
    %12 = vector.extract_strided_slice %9 {offsets = [0, 0], sizes = [8, 256], strides = [1, 1]} : vector<32x256xf32> to vector<8x256xf32>
    %cst_6 = arith.constant dense<0xFF800000> : vector<8xf32>
    %13 = vector.multi_reduction <maximumf>, %10, %cst_6 [1] : vector<8x256xf32> to vector<8xf32>
    %14 = vector.shape_cast %13 : vector<8xf32> to vector<8x1xf32>
    %15 = vector.broadcast %14 : vector<8x1xf32> to vector<8x256xf32>
    %16 = arith.subf %10, %15 : vector<8x256xf32>
    %17 = math.exp %16 : vector<8x256xf32>
    %cst_7 = arith.constant dense<0.000000e+00> : vector<8xf32>
    %18 = vector.multi_reduction <add>, %17, %cst_7 [1] : vector<8x256xf32> to vector<8xf32>
    %19 = vector.shape_cast %18 : vector<8xf32> to vector<8x1xf32>
    %20 = tpu.reciprocal %19 : vector<8x1xf32> -> vector<8x1xf32>
    %21 = vector.broadcast %20 : vector<8x1xf32> to vector<8x256xf32>
    %22 = arith.mulf %17, %21 : vector<8x256xf32>
    %cst_8 = arith.constant dense<0xFF800000> : vector<256xf32>
    %23 = vector.multi_reduction <maximumf>, %11, %cst_8 [0] : vector<8x256xf32> to vector<256xf32>
    %24 = vector.shape_cast %23 : vector<256xf32> to vector<1x256xf32>
    %25 = vector.broadcast %24 : vector<1x256xf32> to vector<8x256xf32>
    %26 = arith.subf %11, %25 : vector<8x256xf32>
    %27 = math.exp %26 : vector<8x256xf32>
    %cst_9 = arith.constant dense<0.000000e+00> : vector<256xf32>
    %28 = vector.multi_reduction <add>, %27, %cst_9 [0] : vector<8x256xf32> to vector<256xf32>
    %29 = vector.shape_cast %28 : vector<256xf32> to vector<1x256xf32>
    %30 = tpu.reciprocal %29 : vector<1x256xf32> -> vector<1x256xf32>
    %31 = vector.broadcast %30 : vector<1x256xf32> to vector<8x256xf32>
    %32 = arith.mulf %27, %31 : vector<8x256xf32>
    %cst_10 = arith.constant dense<0.000000e+00> : vector<8x8xf32>
    %33 = tpu.matmul %22, %12, %cst_10 {dimension_numbers = #tpu.dot_dimension_numbers<[1], [1], [0], [0], [0, 0, 1, 0], [], []>} : vector<8x256xf32>, vector<8x256xf32>, vector<8x8xf32> -> vector<8x8xf32>
    %cst_11 = arith.constant dense<0.000000e+00> : vector<8x256xf32>
    %34 = tpu.matmul %33, %32, %cst_11 {dimension_numbers = #tpu.dot_dimension_numbers<[0], [0], [1], [1], [0, 1, 1, 1], [], []>} : vector<8x8xf32>, vector<8x256xf32>, vector<8x256xf32> -> vector<8x256xf32>
    %35 = vector.extract_strided_slice %7 {offsets = [8, 0], sizes = [8, 256], strides = [1, 1]} : vector<32x256xf32> to vector<8x256xf32>
    %36 = vector.extract_strided_slice %8 {offsets = [8, 0], sizes = [8, 256], strides = [1, 1]} : vector<32x256xf32> to vector<8x256xf32>
    %37 = vector.extract_strided_slice %9 {offsets = [8, 0], sizes = [8, 256], strides = [1, 1]} : vector<32x256xf32> to vector<8x256xf32>
    %cst_12 = arith.constant dense<0xFF800000> : vector<8xf32>
    %38 = vector.multi_reduction <maximumf>, %35, %cst_12 [1] : vector<8x256xf32> to vector<8xf32>
    %39 = vector.shape_cast %38 : vector<8xf32> to vector<8x1xf32>
    %40 = vector.broadcast %39 : vector<8x1xf32> to vector<8x256xf32>
    %41 = arith.subf %35, %40 : vector<8x256xf32>
    %42 = math.exp %41 : vector<8x256xf32>
    %cst_13 = arith.constant dense<0.000000e+00> : vector<8xf32>
    %43 = vector.multi_reduction <add>, %42, %cst_13 [1] : vector<8x256xf32> to vector<8xf32>
    %44 = vector.shape_cast %43 : vector<8xf32> to vector<8x1xf32>
    %45 = tpu.reciprocal %44 : vector<8x1xf32> -> vector<8x1xf32>
    %46 = vector.broadcast %45 : vector<8x1xf32> to vector<8x256xf32>
    %47 = arith.mulf %42, %46 : vector<8x256xf32>
    %cst_14 = arith.constant dense<0xFF800000> : vector<256xf32>
    %48 = vector.multi_reduction <maximumf>, %36, %cst_14 [0] : vector<8x256xf32> to vector<256xf32>
    %49 = vector.shape_cast %48 : vector<256xf32> to vector<1x256xf32>
    %50 = vector.broadcast %49 : vector<1x256xf32> to vector<8x256xf32>
    %51 = arith.subf %36, %50 : vector<8x256xf32>
    %52 = math.exp %51 : vector<8x256xf32>
    %cst_15 = arith.constant dense<0.000000e+00> : vector<256xf32>
    %53 = vector.multi_reduction <add>, %52, %cst_15 [0] : vector<8x256xf32> to vector<256xf32>
    %54 = vector.shape_cast %53 : vector<256xf32> to vector<1x256xf32>
    %55 = tpu.reciprocal %54 : vector<1x256xf32> -> vector<1x256xf32>
    %56 = vector.broadcast %55 : vector<1x256xf32> to vector<8x256xf32>
    %57 = arith.mulf %52, %56 : vector<8x256xf32>
    %cst_16 = arith.constant dense<0.000000e+00> : vector<8x8xf32>
    %58 = tpu.matmul %47, %37, %cst_16 {dimension_numbers = #tpu.dot_dimension_numbers<[1], [1], [0], [0], [0, 0, 1, 0], [], []>} : vector<8x256xf32>, vector<8x256xf32>, vector<8x8xf32> -> vector<8x8xf32>
    %cst_17 = arith.constant dense<0.000000e+00> : vector<8x256xf32>
    %59 = tpu.matmul %58, %57, %cst_17 {dimension_numbers = #tpu.dot_dimension_numbers<[0], [0], [1], [1], [0, 1, 1, 1], [], []>} : vector<8x8xf32>, vector<8x256xf32>, vector<8x256xf32> -> vector<8x256xf32>
    %60 = vector.extract_strided_slice %7 {offsets = [16, 0], sizes = [8, 256], strides = [1, 1]} : vector<32x256xf32> to vector<8x256xf32>
    %61 = vector.extract_strided_slice %8 {offsets = [16, 0], sizes = [8, 256], strides = [1, 1]} : vector<32x256xf32> to vector<8x256xf32>
    %62 = vector.extract_strided_slice %9 {offsets = [16, 0], sizes = [8, 256], strides = [1, 1]} : vector<32x256xf32> to vector<8x256xf32>
    %cst_18 = arith.constant dense<0xFF800000> : vector<8xf32>
    %63 = vector.multi_reduction <maximumf>, %60, %cst_18 [1] : vector<8x256xf32> to vector<8xf32>
    %64 = vector.shape_cast %63 : vector<8xf32> to vector<8x1xf32>
    %65 = vector.broadcast %64 : vector<8x1xf32> to vector<8x256xf32>
    %66 = arith.subf %60, %65 : vector<8x256xf32>
    %67 = math.exp %66 : vector<8x256xf32>
    %cst_19 = arith.constant dense<0.000000e+00> : vector<8xf32>
    %68 = vector.multi_reduction <add>, %67, %cst_19 [1] : vector<8x256xf32> to vector<8xf32>
    %69 = vector.shape_cast %68 : vector<8xf32> to vector<8x1xf32>
    %70 = tpu.reciprocal %69 : vector<8x1xf32> -> vector<8x1xf32>
    %71 = vector.broadcast %70 : vector<8x1xf32> to vector<8x256xf32>
    %72 = arith.mulf %67, %71 : vector<8x256xf32>
    %cst_20 = arith.constant dense<0xFF800000> : vector<256xf32>
    %73 = vector.multi_reduction <maximumf>, %61, %cst_20 [0] : vector<8x256xf32> to vector<256xf32>
    %74 = vector.shape_cast %73 : vector<256xf32> to vector<1x256xf32>
    %75 = vector.broadcast %74 : vector<1x256xf32> to vector<8x256xf32>
    %76 = arith.subf %61, %75 : vector<8x256xf32>
    %77 = math.exp %76 : vector<8x256xf32>
    %cst_21 = arith.constant dense<0.000000e+00> : vector<256xf32>
    %78 = vector.multi_reduction <add>, %77, %cst_21 [0] : vector<8x256xf32> to vector<256xf32>
    %79 = vector.shape_cast %78 : vector<256xf32> to vector<1x256xf32>
    %80 = tpu.reciprocal %79 : vector<1x256xf32> -> vector<1x256xf32>
    %81 = vector.broadcast %80 : vector<1x256xf32> to vector<8x256xf32>
    %82 = arith.mulf %77, %81 : vector<8x256xf32>
    %cst_22 = arith.constant dense<0.000000e+00> : vector<8x8xf32>
    %83 = tpu.matmul %72, %62, %cst_22 {dimension_numbers = #tpu.dot_dimension_numbers<[1], [1], [0], [0], [0, 0, 1, 0], [], []>} : vector<8x256xf32>, vector<8x256xf32>, vector<8x8xf32> -> vector<8x8xf32>
    %cst_23 = arith.constant dense<0.000000e+00> : vector<8x256xf32>
    %84 = tpu.matmul %83, %82, %cst_23 {dimension_numbers = #tpu.dot_dimension_numbers<[0], [0], [1], [1], [0, 1, 1, 1], [], []>} : vector<8x8xf32>, vector<8x256xf32>, vector<8x256xf32> -> vector<8x256xf32>
    %85 = vector.extract_strided_slice %7 {offsets = [24, 0], sizes = [8, 256], strides = [1, 1]} : vector<32x256xf32> to vector<8x256xf32>
    %86 = vector.extract_strided_slice %8 {offsets = [24, 0], sizes = [8, 256], strides = [1, 1]} : vector<32x256xf32> to vector<8x256xf32>
    %87 = vector.extract_strided_slice %9 {offsets = [24, 0], sizes = [8, 256], strides = [1, 1]} : vector<32x256xf32> to vector<8x256xf32>
    %cst_24 = arith.constant dense<0xFF800000> : vector<8xf32>
    %88 = vector.multi_reduction <maximumf>, %85, %cst_24 [1] : vector<8x256xf32> to vector<8xf32>
    %89 = vector.shape_cast %88 : vector<8xf32> to vector<8x1xf32>
    %90 = vector.broadcast %89 : vector<8x1xf32> to vector<8x256xf32>
    %91 = arith.subf %85, %90 : vector<8x256xf32>
    %92 = math.exp %91 : vector<8x256xf32>
    %cst_25 = arith.constant dense<0.000000e+00> : vector<8xf32>
    %93 = vector.multi_reduction <add>, %92, %cst_25 [1] : vector<8x256xf32> to vector<8xf32>
    %94 = vector.shape_cast %93 : vector<8xf32> to vector<8x1xf32>
    %95 = tpu.reciprocal %94 : vector<8x1xf32> -> vector<8x1xf32>
    %96 = vector.broadcast %95 : vector<8x1xf32> to vector<8x256xf32>
    %97 = arith.mulf %92, %96 : vector<8x256xf32>
    %cst_26 = arith.constant dense<0xFF800000> : vector<256xf32>
    %98 = vector.multi_reduction <maximumf>, %86, %cst_26 [0] : vector<8x256xf32> to vector<256xf32>
    %99 = vector.shape_cast %98 : vector<256xf32> to vector<1x256xf32>
    %100 = vector.broadcast %99 : vector<1x256xf32> to vector<8x256xf32>
    %101 = arith.subf %86, %100 : vector<8x256xf32>
    %102 = math.exp %101 : vector<8x256xf32>
    %cst_27 = arith.constant dense<0.000000e+00> : vector<256xf32>
    %103 = vector.multi_reduction <add>, %102, %cst_27 [0] : vector<8x256xf32> to vector<256xf32>
    %104 = vector.shape_cast %103 : vector<256xf32> to vector<1x256xf32>
    %105 = tpu.reciprocal %104 : vector<1x256xf32> -> vector<1x256xf32>
    %106 = vector.broadcast %105 : vector<1x256xf32> to vector<8x256xf32>
    %107 = arith.mulf %102, %106 : vector<8x256xf32>
    %cst_28 = arith.constant dense<0.000000e+00> : vector<8x8xf32>
    %108 = tpu.matmul %97, %87, %cst_28 {dimension_numbers = #tpu.dot_dimension_numbers<[1], [1], [0], [0], [0, 0, 1, 0], [], []>} : vector<8x256xf32>, vector<8x256xf32>, vector<8x8xf32> -> vector<8x8xf32>
    %cst_29 = arith.constant dense<0.000000e+00> : vector<8x256xf32>
    %109 = tpu.matmul %108, %107, %cst_29 {dimension_numbers = #tpu.dot_dimension_numbers<[0], [0], [1], [1], [0, 1, 1, 1], [], []>} : vector<8x8xf32>, vector<8x256xf32>, vector<8x256xf32> -> vector<8x256xf32>
    %110 = tpu.concatenate %34, %59, %84, %109 in 0 : vector<8x256xf32>, vector<8x256xf32>, vector<8x256xf32>, vector<8x256xf32> -> vector<32x256xf32>
    %c0_30 = arith.constant 0 : index
    %c0_31 = arith.constant 0 : index
    %111 = vector.load %arg4[%c0_30, %c0_31] : memref<32x32xf32, #tpu.memory_space<vmem>>, vector<32x32xf32>
    %cst_32 = arith.constant dense<0.000000e+00> : vector<32x256xf32>
    %112 = tpu.matmul %111, %110, %cst_32 {dimension_numbers = #tpu.dot_dimension_numbers<[1], [0], [0], [1], [0, 0, 1, 1], [], []>} : vector<32x32xf32>, vector<32x256xf32>, vector<32x256xf32> -> vector<32x256xf32>
    %c0_33 = arith.constant 0 : index
    %c0_34 = arith.constant 0 : index
    %113 = vector.load %arg5[%c0_33, %c0_34] : memref<32x1xf32, #tpu.memory_space<vmem>>, vector<32x1xf32>
    %114 = vector.broadcast %113 : vector<32x1xf32> to vector<32x256xf32>
    %115 = arith.addf %112, %114 : vector<32x256xf32>
    %116 = arith.addf %115, %1 : vector<32x256xf32>
    %c0_35 = arith.constant 0 : index
    %c0_36 = arith.constant 0 : index
    %c0_37 = arith.constant 0 : index
    %117 = vector.load %arg6[%c0_35, %c0_36, %c0_37] : memref<1x32x256xf32, #tpu.memory_space<vmem>>, vector<1x32x256xf32>
    %118 = vector.shape_cast %117 : vector<1x32x256xf32> to vector<32x256xf32>
    %119 = vector.shape_cast %116 : vector<32x256xf32> to vector<1x32x256xf32>
    tpu.vector_store %arg6[%c0_35, %c0_36, %c0_37], %119 {strides = array<i32>} : memref<1x32x256xf32, #tpu.memory_space<vmem>>, vector<1x32x256xf32>,
    return
  }
  func.func @transform_0(%arg0: i32) -> (i32, i32, i32) {
    %c0_i32 = arith.constant 0 : i32
    %c0_i32_0 = arith.constant 0 : i32
    %c0_i32_1 = arith.constant 0 : i32
    return %arg0, %c0_i32, %c0_i32_0 : i32, i32, i32
  }
  func.func @transform_1(%arg0: i32) -> (i32, i32) {
    %c0_i32 = arith.constant 0 : i32
    %c0_i32_0 = arith.constant 0 : i32
    %c0_i32_1 = arith.constant 0 : i32
    return %c0_i32, %c0_i32_0 : i32, i32
  }
  func.func @transform_2(%arg0: i32) -> (i32, i32) {
    %c0_i32 = arith.constant 0 : i32
    %c0_i32_0 = arith.constant 0 : i32
    %c0_i32_1 = arith.constant 0 : i32
    return %c0_i32, %c0_i32_0 : i32, i32
  }
  func.func @transform_3(%arg0: i32) -> (i32, i32) {
    %c0_i32 = arith.constant 0 : i32
    %c0_i32_0 = arith.constant 0 : i32
    %c0_i32_1 = arith.constant 0 : i32
    return %c0_i32, %c0_i32_0 : i32, i32
  }
  func.func @transform_4(%arg0: i32) -> (i32, i32) {
    %c0_i32 = arith.constant 0 : i32
    %c0_i32_0 = arith.constant 0 : i32
    %c0_i32_1 = arith.constant 0 : i32
    return %c0_i32, %c0_i32_0 : i32, i32
  }
  func.func @transform_5(%arg0: i32) -> (i32, i32, i32) {
    %c0_i32 = arith.constant 0 : i32
    %c0_i32_0 = arith.constant 0 : i32
    %c0_i32_1 = arith.constant 0 : i32
    return %arg0, %c0_i32, %c0_i32_0 : i32, i32, i32
  }
}

</mosaic_0001>

<llo_original>
// kernel: tpu_custom_call.1
$region0: #{tpu_custom_call.1}
  #allocation0 [shape = 'u32[]', space=smem, size = 0x4, offset = 0x4, fixed_abs, tag = 'smem constant byte address 0x4 - core index']
  #allocation1 [shape = 'u32[72,128]{1,0:T(1,128)}', space=vmem, size = 0x9000, scoped, tag = 'internal scratch']
  %s0 = inlined_call_operand.vmem [shape: f32[2,32,256], index: 0, kind: input, shape index: {}]
  %s1 = inlined_call_operand.vmem [shape: f32[96,32], index: 1, kind: input, shape index: {}]
  %s2 = inlined_call_operand.vmem [shape: f32[96,1], index: 2, kind: input, shape index: {}]
  %s3 = inlined_call_operand.vmem [shape: f32[32,32], index: 3, kind: input, shape index: {}]
  %s4 = inlined_call_operand.vmem [shape: f32[32,1], index: 4, kind: input, shape index: {}]
  %s5 = inlined_call_operand.hbm [shape: f32[2,32,256], index: 5, kind: output, shape index: {}]
  %s6 = sld [smem:[#allocation0]]
  $region53: #{tpu_custom_call.1} parent=0
    _
  %s8 = ssub.s32 1, %s6
  %s9 = scalar_select 0, %s8, %s6
  $region1: #{tpu_custom_call.1} parent=0
    #allocation2 [shape = 'u8[65536]{0}', space=vmem, size = 0x10000, scoped, tag = 'output window, operand 0']
    #allocation3 [shape = 's32[2]{0}', space=sflag, size = 0x8, scoped, tag = 'scoped memory for tpu_custom_call.1']
    %10 = vsyncpa [#allocation3], 0
    %s11 = scalar_lea.sflag [#allocation3], 1
    %12 = vsyncpa %s11, 0
    loop: start=0, step=1, limit=4
    $region2: #{tpu_custom_call.1} parent=1 // loop_pre_header
      _
    $region3: #{tpu_custom_call.1} parent=1 // loop_header
      %s14 = sphi 0, %s18
      %p15 = scmp.ge.s32.totalorder %s14, 4
      %s24 = sphi 0, %s26
      %s27 = sphi 0, %s24
      %s28 = sphi 0, %s27
      %s44 = sphi 0, %s28
      %s48 = sphi 0, %s48
      %s50 = sphi 0, %s48
      %s51 = sphi 0, %s50
      %s65 = sphi 0, %s51
      %s69 = sphi 0, %s69
      %s71 = sphi 0, %s69
      %s72 = sphi 0, %s71
      %s86 = sphi 0, %s72
      %s90 = sphi 0, %s90
      %s92 = sphi 0, %s90
      %s93 = sphi 0, %s92
      %s107 = sphi 0, %s93
      %s111 = sphi 0, %s111
      %s113 = sphi 0, %s111
      %s114 = sphi 0, %s113
      %s128 = sphi 0, %s114
      %s134 = sphi 0, %s136
      %s137 = sphi 0, %s134
      %s138 = sphi 0, %s137
      %s154 = sphi 0, %s138
    $region4: #{tpu_custom_call.1} parent=1 // loop_header_branch
      %17 = sbr.rel (%p15) target = $region8
    $region5: #{tpu_custom_call.1} parent=1 // loop_body
      %s19 = ssub.s32 %s14, 1
      %s20 = ssub.s32 %s14, 2
      %s21 = sadd.s32 %s14, 1
      %s22 = ssub.s32 %s14, %s21
      %p23 = scmp.eq.s32.totalorder %s22, 0
      %s25 = sadd.s32 %s24, 1
      %s26 = scalar_select %p23, %s24, %s25
      %p29 = pneg %p23
      %p30 = scmp.eq.s32.totalorder %s14, 1
      %p31 = por %p29, %p30
      %p32 = scmp.ne.s32.totalorder %s24, %s27
      %p33 = scmp.eq.s32.totalorder %s14, 0
      %p34 = por %p32, %p33
      %p35 = scmp.ne.s32.totalorder %s24, %s27
      %p36 = scmp.eq.s32.totalorder %s19, 1
      %p37 = por %p35, %p36
      %p38 = scmp.ne.s32.totalorder %s27, %s28
      %p39 = scmp.eq.s32.totalorder %s19, 0
      %p40 = por %p38, %p39
      %p41 = scmp.ne.s32.totalorder %s27, %s28
      %p42 = scmp.eq.s32.totalorder %s20, 1
      %p43 = por %p41, %p42
      %p45 = scmp.ne.s32.totalorder %s28, %s44
      %p46 = scmp.eq.s32.totalorder %s20, 0
      %p47 = por %p45, %p46
      %s49 = sadd.s32 %s48, 1
      %p52 = scmp.eq.s32.totalorder %s14, 1
      %p53 = scmp.ne.s32.totalorder %s48, %s50
      %p54 = scmp.eq.s32.totalorder %s14, 0
      %p55 = por %p53, %p54
      %p56 = scmp.ne.s32.totalorder %s48, %s50
      %p57 = scmp.eq.s32.totalorder %s19, 1
      %p58 = por %p56, %p57
      %p59 = scmp.ne.s32.totalorder %s50, %s51
      %p60 = scmp.eq.s32.totalorder %s19, 0
      %p61 = por %p59, %p60
      %p62 = scmp.ne.s32.totalorder %s50, %s51
      %p63 = scmp.eq.s32.totalorder %s20, 1
      %p64 = por %p62, %p63
      %p66 = scmp.ne.s32.totalorder %s51, %s65
      %p67 = scmp.eq.s32.totalorder %s20, 0
      %p68 = por %p66, %p67
      %s70 = sadd.s32 %s69, 1
      %p73 = scmp.eq.s32.totalorder %s14, 1
      %p74 = scmp.ne.s32.totalorder %s69, %s71
      %p75 = scmp.eq.s32.totalorder %s14, 0
      %p76 = por %p74, %p75
      %p77 = scmp.ne.s32.totalorder %s69, %s71
      %p78 = scmp.eq.s32.totalorder %s19, 1
      %p79 = por %p77, %p78
      %p80 = scmp.ne.s32.totalorder %s71, %s72
      %p81 = scmp.eq.s32.totalorder %s19, 0
      %p82 = por %p80, %p81
      %p83 = scmp.ne.s32.totalorder %s71, %s72
      %p84 = scmp.eq.s32.totalorder %s20, 1
      %p85 = por %p83, %p84
      %p87 = scmp.ne.s32.totalorder %s72, %s86
      %p88 = scmp.eq.s32.totalorder %s20, 0
      %p89 = por %p87, %p88
      %s91 = sadd.s32 %s90, 1
      %p94 = scmp.eq.s32.totalorder %s14, 1
      %p95 = scmp.ne.s32.totalorder %s90, %s92
      %p96 = scmp.eq.s32.totalorder %s14, 0
      %p97 = por %p95, %p96
      %p98 = scmp.ne.s32.totalorder %s90, %s92
      %p99 = scmp.eq.s32.totalorder %s19, 1
      %p100 = por %p98, %p99
      %p101 = scmp.ne.s32.totalorder %s92, %s93
      %p102 = scmp.eq.s32.totalorder %s19, 0
      %p103 = por %p101, %p102
      %p104 = scmp.ne.s32.totalorder %s92, %s93
      %p105 = scmp.eq.s32.totalorder %s20, 1
      %p106 = por %p104, %p105
      %p108 = scmp.ne.s32.totalorder %s93, %s107
      %p109 = scmp.eq.s32.totalorder %s20, 0
      %p110 = por %p108, %p109
      %s112 = sadd.s32 %s111, 1
      %p115 = scmp.eq.s32.totalorder %s14, 1
      %p116 = scmp.ne.s32.totalorder %s111, %s113
      %p117 = scmp.eq.s32.totalorder %s14, 0
      %p118 = por %p116, %p117
      %p119 = scmp.ne.s32.totalorder %s111, %s113
      %p120 = scmp.eq.s32.totalorder %s19, 1
      %p121 = por %p119, %p120
      %p122 = scmp.ne.s32.totalorder %s113, %s114
      %p123 = scmp.eq.s32.totalorder %s19, 0
      %p124 = por %p122, %p123
      %p125 = scmp.ne.s32.totalorder %s113, %s114
      %p126 = scmp.eq.s32.totalorder %s20, 1
      %p127 = por %p125, %p126
      %p129 = scmp.ne.s32.totalorder %s114, %s128
      %p130 = scmp.eq.s32.totalorder %s20, 0
      %p131 = por %p129, %p130
      %s132 = ssub.s32 %s14, %s21
      %p133 = scmp.eq.s32.totalorder %s132, 0
      %s135 = sadd.s32 %s134, 1
      %s136 = scalar_select %p133, %s134, %s135
      %p139 = pneg %p133
      %p140 = scmp.eq.s32.totalorder %s14, 1
      %p141 = por %p139, %p140
      %p142 = scmp.ne.s32.totalorder %s134, %s137
      %p143 = scmp.eq.s32.totalorder %s14, 0
      %p144 = por %p142, %p143
      %p145 = scmp.ne.s32.totalorder %s134, %s137
      %p146 = scmp.eq.s32.totalorder %s19, 1
      %p147 = por %p145, %p146
      %p148 = scmp.ne.s32.totalorder %s137, %s138
      %p149 = scmp.eq.s32.totalorder %s19, 0
      %p150 = por %p148, %p149
      %p151 = scmp.ne.s32.totalorder %s137, %s138
      %p152 = scmp.eq.s32.totalorder %s20, 1
      %p153 = por %p151, %p152
      %p155 = scmp.ne.s32.totalorder %s138, %s154
      %p156 = scmp.eq.s32.totalorder %s20, 0
      %p157 = por %p155, %p156
      %p158 = scmp.le.s32.totalorder 1, %s14
      %p159 = scmp.lt.s32.totalorder %s14, 3
      %p160 = pnand %p158, %p159
      %p161 = pneg %p160
      // Predicated region
      $region9: #{tpu_custom_call.1} parent=5 // pred_check
        _
      $region10: #{tpu_custom_call.1} parent=5 // pred_check_branch
        %163 = sbr.rel (%p160) target = $region12
      $region11: #{tpu_custom_call.1} parent=5 // pred_region
        %s164 = ssub.s32 %s14, 1
        // Predicated region
        $region13: #{tpu_custom_call.1} parent=11 // pred_check
          %p165 = pneg %p61
        $region14: #{tpu_custom_call.1} parent=11 // pred_check_branch
          %167 = sbr.rel (%p165) target = $region16
        $region15: #{tpu_custom_call.1} parent=11 // pred_region
          _
        $region16: #{tpu_custom_call.1} parent=11 // pred_fallthru
          _
        // Predicated region
        $region17: #{tpu_custom_call.1} parent=11 // pred_check
          %p168 = pneg %p82
        $region18: #{tpu_custom_call.1} parent=11 // pred_check_branch
          %170 = sbr.rel (%p168) target = $region20
        $region19: #{tpu_custom_call.1} parent=11 // pred_region
          _
        $region20: #{tpu_custom_call.1} parent=11 // pred_fallthru
          _
        // Predicated region
        $region21: #{tpu_custom_call.1} parent=11 // pred_check
          %p171 = pneg %p103
        $region22: #{tpu_custom_call.1} parent=11 // pred_check_branch
          %173 = sbr.rel (%p171) target = $region24
        $region23: #{tpu_custom_call.1} parent=11 // pred_region
          _
        $region24: #{tpu_custom_call.1} parent=11 // pred_fallthru
          _
        // Predicated region
        $region25: #{tpu_custom_call.1} parent=11 // pred_check
          %p174 = pneg %p124
        $region26: #{tpu_custom_call.1} parent=11 // pred_check_branch
          %176 = sbr.rel (%p174) target = $region28
        $region27: #{tpu_custom_call.1} parent=11 // pred_region
          _
        $region28: #{tpu_custom_call.1} parent=11 // pred_fallthru
          _
      $region12: #{tpu_custom_call.1} parent=5 // pred_fallthru
        _
      %p177 = scmp.lt.s32.totalorder %s14, 2
      // Predicated region
      $region29: #{tpu_custom_call.1} parent=5 // pred_check
        %p178 = pneg %p177
      $region30: #{tpu_custom_call.1} parent=5 // pred_check_branch
        %180 = sbr.rel (%p178) target = $region32
      $region31: #{tpu_custom_call.1} parent=5 // pred_region
        // Predicated region
        $region33: #{tpu_custom_call.1} parent=31 // pred_check
          %p181 = pneg %p34
        $region34: #{tpu_custom_call.1} parent=31 // pred_check_branch
          %183 = sbr.rel (%p181) target = $region36
        $region35: #{tpu_custom_call.1} parent=31 // pred_region
          %p184 = scmp.lt.s32.totalorder %s14, 1
          %s185 = scalar_select %p184, %s14, 1
          %s186 = smul.addr %s185, 8
          %s187 = smul.addr %s186, 8
          %s188 = scalar_lea.vmem %s0, %s187
        $region36: #{tpu_custom_call.1} parent=31 // pred_fallthru
          _
      $region32: #{tpu_custom_call.1} parent=5 // pred_fallthru
        _
      %p189 = scmp.le.s32.totalorder 1, %s14
      %p190 = scmp.lt.s32.totalorder %s14, 3
      %p191 = pnand %p189, %p190
      %p192 = pneg %p191
      // Predicated region
      $region37: #{tpu_custom_call.1} parent=5 // pred_check
        _
      $region38: #{tpu_custom_call.1} parent=5 // pred_check_branch
        %194 = sbr.rel (%p191) target = $region40
      $region39: #{tpu_custom_call.1} parent=5 // pred_region
        %s195 = ssub.s32 %s14, 1
        %p196 = scmp.lt.s32.totalorder %s19, 1
        %s197 = scalar_select %p196, %s19, 1
        %s198 = smul.addr %s197, 8
        %s199 = smul.addr %s198, 8
        %s200 = scalar_lea.vmem %s0, %s199
        %p201 = pneg %p40
        %p202 = pneg %p37
        %p203 = pneg %p61
        %p204 = pneg %p58
        %p205 = pneg %p82
        %p206 = pneg %p79
        %p207 = pneg %p103
        %p208 = pneg %p100
        %p209 = pneg %p124
        %p210 = pneg %p121
        %p211 = pneg %p150
        %p212 = pneg %p147
        %s213 = sand.u32 %s137, 1
        %s214 = scalar_lea.sflag [#allocation3], %s213
        %s215 = sand.u32 %s137, 1
        %s216 = smul.addr %s215, 64
        %s217 = scalar_lea.vmem [#allocation2], %s216
        %p218 = scmp.lt.s32.totalorder %s19, 1
        %s219 = scalar_select %p218, %s19, 1
        %s220 = smul.addr %s219, 8
        %s221 = smul.addr %s220, 8
        %s222 = scalar_lea.vmem %s0, %s221
        %v223 = vld [vmem:[%s222] sm:$0xff]
        %v224 = vld [vmem:[%s222 + $0x8] sm:$0xff]
        %v225 = vld [vmem:[%s222 + $0x10] sm:$0xff]
        %v226 = vld [vmem:[%s222 + $0x18] sm:$0xff]
        %v227 = vld [vmem:[%s222 + $0x20] sm:$0xff]
        %v228 = vld [vmem:[%s222 + $0x28] sm:$0xff]
        %v229 = vld [vmem:[%s222 + $0x30] sm:$0xff]
        %v230 = vld [vmem:[%s222 + $0x38] sm:$0xff]
        %v231 = vld [vmem:[%s1] sm:$0xff]
        %v232 = vld [vmem:[%s1 + $0x8] sm:$0xff]
        %v233 = vld [vmem:[%s1 + $0x10] sm:$0xff]
        %v234 = vld [vmem:[%s1 + $0x18] sm:$0xff]
        %v235 = vld [vmem:[%s1 + $0x20] sm:$0xff]
        %v236 = vld [vmem:[%s1 + $0x28] sm:$0xff]
        %v237 = vld [vmem:[%s1 + $0x30] sm:$0xff]
        %v238 = vld [vmem:[%s1 + $0x38] sm:$0xff]
        %v239 = vld [vmem:[%s1 + $0x40] sm:$0xff]
        %v240 = vld [vmem:[%s1 + $0x48] sm:$0xff]
        %v241 = vld [vmem:[%s1 + $0x50] sm:$0xff]
        %v242 = vld [vmem:[%s1 + $0x58] sm:$0xff]
        %v243 = vld [vmem:[%s2] sm:$0xff]
        %v244 = vld [vmem:[%s2 + $0x8] sm:$0xff]
        %v245 = vld [vmem:[%s2 + $0x10] sm:$0xff]
        %v246 = vld [vmem:[%s2 + $0x18] sm:$0xff]
        %v247 = vld [vmem:[%s2 + $0x20] sm:$0xff]
        %v248 = vld [vmem:[%s2 + $0x28] sm:$0xff]
        %v249 = vld [vmem:[%s2 + $0x30] sm:$0xff]
        %v250 = vld [vmem:[%s2 + $0x38] sm:$0xff]
        %v251 = vld [vmem:[%s2 + $0x40] sm:$0xff]
        %v252 = vld [vmem:[%s2 + $0x48] sm:$0xff]
        %v253 = vld [vmem:[%s2 + $0x50] sm:$0xff]
        %v254 = vld [vmem:[%s2 + $0x58] sm:$0xff]
        %256 = vset.pattern.permute.xlu0 0
        %257 = vperm.xlu0 %256, %v243
        %v258 = vpop.permute.xlu0 %257
        %261 = vset.pattern.permute.xlu0 0
        %262 = vperm.xlu0 %261, %v244
        %v263 = vpop.permute.xlu0 %262
        %266 = vset.pattern.permute.xlu0 0
        %267 = vperm.xlu0 %266, %v245
        %v268 = vpop.permute.xlu0 %267
        %271 = vset.pattern.permute.xlu0 0
        %272 = vperm.xlu0 %271, %v246
        %v273 = vpop.permute.xlu0 %272
        %276 = vset.pattern.permute.xlu0 0
        %277 = vperm.xlu0 %276, %v247
        %v278 = vpop.permute.xlu0 %277
        %281 = vset.pattern.permute.xlu0 0
        %282 = vperm.xlu0 %281, %v248
        %v283 = vpop.permute.xlu0 %282
        %286 = vset.pattern.permute.xlu0 0
        %287 = vperm.xlu0 %286, %v249
        %v288 = vpop.permute.xlu0 %287
        %291 = vset.pattern.permute.xlu0 0
        %292 = vperm.xlu0 %291, %v250
        %v293 = vpop.permute.xlu0 %292
        %296 = vset.pattern.permute.xlu0 0
        %297 = vperm.xlu0 %296, %v251
        %v298 = vpop.permute.xlu0 %297
        %301 = vset.pattern.permute.xlu0 0
        %302 = vperm.xlu0 %301, %v252
        %v303 = vpop.permute.xlu0 %302
        %306 = vset.pattern.permute.xlu0 0
        %307 = vperm.xlu0 %306, %v253
        %v308 = vpop.permute.xlu0 %307
        %311 = vset.pattern.permute.xlu0 0
        %312 = vperm.xlu0 %311, %v254
        %v313 = vpop.permute.xlu0 %312
        %vm315 = vcmask 261120
        %v317 = vsel %vm315, %v231, 0
        %v320 = vsel %vm315, %v232, 0
        %v323 = vsel %vm315, %v233, 0
        %v326 = vsel %vm315, %v234, 0
        %v329 = vsel %vm315, %v235, 0
        %v332 = vsel %vm315, %v236, 0
        %v335 = vsel %vm315, %v237, 0
        %v338 = vsel %vm315, %v238, 0
        %v341 = vsel %vm315, %v239, 0
        %v344 = vsel %vm315, %v240, 0
        %v347 = vsel %vm315, %v241, 0
        %v350 = vsel %vm315, %v242, 0
        %352 = vmatpush.msra.mxu0 0.0
        %353 = vmatpush.msra.mxu0 0.0
        %354 = vmatpush.msra.mxu0 0.0
        %355 = vmatpush.msra.mxu0 0.0
        %356 = vmatpush.msra.mxu0 0.0
        %357 = vmatpush.msra.mxu0 0.0
        %358 = vmatpush.msra.mxu0 0.0
        %359 = vmatpush.msra.mxu0 0.0
        %360 = vmatpush.msra.mxu0 0.0
        %361 = vmatpush.msra.mxu0 0.0
        %362 = vmatpush.msra.mxu0 0.0
        %363 = vmatpush.msra.mxu0 0.0
        %364 = vmatpush.msra.mxu0 %v229
        %365 = vmatpush.msra.mxu0 %v227
        %366 = vmatpush.msra.mxu0 %v225
        %367 = vmatpush.msra.mxu0 %v223
        %368 = vmatmul.f32.gmra.mxu0 %v317
        %v369 = vpop.f32.mrf.mxu0
        %v370 = vadd.f32 %v258, %v369
        %371 = vmatmul.f32.gmra.mxu0 %v320
        %v372 = vpop.f32.mrf.mxu0
        %v373 = vadd.f32 %v263, %v372
        %374 = vmatmul.f32.gmra.mxu0 %v323
        %v375 = vpop.f32.mrf.mxu0
        %v376 = vadd.f32 %v268, %v375
        %377 = vmatmul.f32.gmra.mxu0 %v326
        %v378 = vpop.f32.mrf.mxu0
        %v379 = vadd.f32 %v273, %v378
        %380 = vmatmul.f32.gmra.mxu0 %v329
        %v381 = vpop.f32.mrf.mxu0
        %v382 = vadd.f32 %v278, %v381
        %383 = vmatmul.f32.gmra.mxu0 %v332
        %v384 = vpop.f32.mrf.mxu0
        %v385 = vadd.f32 %v283, %v384
        %386 = vmatmul.f32.gmra.mxu0 %v335
        %v387 = vpop.f32.mrf.mxu0
        %v388 = vadd.f32 %v288, %v387
        %389 = vmatmul.f32.gmra.mxu0 %v338
        %v390 = vpop.f32.mrf.mxu0
        %v391 = vadd.f32 %v293, %v390
        %392 = vmatmul.f32.gmra.mxu0 %v341
        %v393 = vpop.f32.mrf.mxu0
        %v394 = vadd.f32 %v298, %v393
        %395 = vmatmul.f32.gmra.mxu0 %v344
        %v396 = vpop.f32.mrf.mxu0
        %v397 = vadd.f32 %v303, %v396
        %398 = vmatmul.f32.gmra.mxu0 %v347
        %v399 = vpop.f32.mrf.mxu0
        %v400 = vadd.f32 %v308, %v399
        %401 = vmatmul.f32.gmra.mxu0 %v350
        %v402 = vpop.f32.mrf.mxu0
        %v403 = vadd.f32 %v313, %v402
        %404 = vdwg.mxu0
        %405 = vmatpush.msra.mxu0 0.0
        %406 = vmatpush.msra.mxu0 0.0
        %407 = vmatpush.msra.mxu0 0.0
        %408 = vmatpush.msra.mxu0 0.0
        %409 = vmatpush.msra.mxu0 0.0
        %410 = vmatpush.msra.mxu0 0.0
        %411 = vmatpush.msra.mxu0 0.0
        %412 = vmatpush.msra.mxu0 0.0
        %413 = vmatpush.msra.mxu0 0.0
        %414 = vmatpush.msra.mxu0 0.0
        %415 = vmatpush.msra.mxu0 0.0
        %416 = vmatpush.msra.mxu0 0.0
        %417 = vmatpush.msra.mxu0 %v230
        %418 = vmatpush.msra.mxu0 %v228
        %419 = vmatpush.msra.mxu0 %v226
        %420 = vmatpush.msra.mxu0 %v224
        %421 = vmatmul.f32.gmra.mxu0 %v317
        %v422 = vpop.f32.mrf.mxu0
        %v423 = vadd.f32 %v258, %v422
        %424 = vmatmul.f32.gmra.mxu0 %v320
        %v425 = vpop.f32.mrf.mxu0
        %v426 = vadd.f32 %v263, %v425
        %427 = vmatmul.f32.gmra.mxu0 %v323
        %v428 = vpop.f32.mrf.mxu0
        %v429 = vadd.f32 %v268, %v428
        %430 = vmatmul.f32.gmra.mxu0 %v326
        %v431 = vpop.f32.mrf.mxu0
        %v432 = vadd.f32 %v273, %v431
        %433 = vmatmul.f32.gmra.mxu0 %v329
        %v434 = vpop.f32.mrf.mxu0
        %v435 = vadd.f32 %v278, %v434
        %436 = vmatmul.f32.gmra.mxu0 %v332
        %v437 = vpop.f32.mrf.mxu0
        %v438 = vadd.f32 %v283, %v437
        %439 = vmatmul.f32.gmra.mxu0 %v335
        %v440 = vpop.f32.mrf.mxu0
        %v441 = vadd.f32 %v288, %v440
        %442 = vmatmul.f32.gmra.mxu0 %v338
        %v443 = vpop.f32.mrf.mxu0
        %v444 = vadd.f32 %v293, %v443
        %445 = vmatmul.f32.gmra.mxu0 %v341
        %v446 = vpop.f32.mrf.mxu0
        %v447 = vadd.f32 %v298, %v446
        %448 = vmatmul.f32.gmra.mxu0 %v344
        %v449 = vpop.f32.mrf.mxu0
        %v450 = vadd.f32 %v303, %v449
        %451 = vmatmul.f32.gmra.mxu0 %v347
        %v452 = vpop.f32.mrf.mxu0
        %v453 = vadd.f32 %v308, %v452
        %454 = vmatmul.f32.gmra.mxu0 %v350
        %v455 = vpop.f32.mrf.mxu0
        %v456 = vadd.f32 %v313, %v455
        %457 = vdwg.mxu0
        %v458 = vmax.f32 %v370, %v423
        %459 = vmax.xlane.f32.xlu0 %v458
        %v460 = vpop.xlane.xlu0 %459
        %v461 = vsub.f32 %v370, %v460
        %v462 = vsub.f32 %v423, %v460
        %v463 = vmul.f32 %v461, 1.442695
        %v464 = vpow.pop %v463
        %v465 = vmul.f32 %v462, 1.442695
        %v466 = vpow.pop %v465
        %v467 = vadd.f32 %v464, %v466
        %468 = vadd.xlane.f32.xlu0 %v467
        %v469 = vpop.xlane.xlu0 %468
        %v470 = vrcp.pop %v469
        %v471 = vmul.f32 %v469, %v470
        %v472 = vsub.f32 1.0, %v471
        %v473 = vmul.f32 %v470, %v472
        %v474 = vadd.f32 %v470, %v473
        %vm475 = vweird.f32 %v469
        %vm476 = vweird.f32 %v470
        %vm477 = vmor %vm475, %vm476
        %v478 = vsel %vm477, %v470, %v474
        %v479 = vand.u32 2147483647, %v469
        %vm480 = vcmp.eq.f32.partialorder %v479, 8.507059e+37
        %v481 = vand.u32 %v469, 2147483648
        %v482 = vor.u32 1.1754944e-38, %v481
        %v483 = vsel %vm480, %v482, %v478
        %v484 = vmul.f32 %v464, %v483
        %v485 = vmul.f32 %v466, %v483
        %v486 = vrot.slane %v382, 4
        %v487 = vmax.f32 %v382, %v486
        %v488 = vrot.slane %v487, 2
        %v489 = vmax.f32 %v487, %v488
        %v490 = vrot.slane %v489, 1
        %v491 = vmax.f32 %v489, %v490
        %v492 = vrot.slane %v435, 4
        %v493 = vmax.f32 %v435, %v492
        %v494 = vrot.slane %v493, 2
        %v495 = vmax.f32 %v493, %v494
        %v496 = vrot.slane %v495, 1
        %v497 = vmax.f32 %v495, %v496
        %v498 = vsub.f32 %v382, %v491
        %v499 = vsub.f32 %v435, %v497
        %v500 = vmul.f32 %v498, 1.442695
        %v501 = vpow.pop %v500
        %v502 = vmul.f32 %v499, 1.442695
        %v503 = vpow.pop %v502
        %v504 = vrot.slane %v501, 4
        %v505 = vadd.f32 %v501, %v504
        %v506 = vrot.slane %v505, 2
        %v507 = vadd.f32 %v505, %v506
        %v508 = vrot.slane %v507, 1
        %v509 = vadd.f32 %v507, %v508
        %v510 = vrot.slane %v503, 4
        %v511 = vadd.f32 %v503, %v510
        %v512 = vrot.slane %v511, 2
        %v513 = vadd.f32 %v511, %v512
        %v514 = vrot.slane %v513, 1
        %v515 = vadd.f32 %v513, %v514
        %v516 = vrcp.pop %v509
        %v517 = vmul.f32 %v509, %v516
        %v518 = vsub.f32 1.0, %v517
        %v519 = vmul.f32 %v516, %v518
        %v520 = vadd.f32 %v516, %v519
        %vm521 = vweird.f32 %v509
        %vm522 = vweird.f32 %v516
        %vm523 = vmor %vm521, %vm522
        %v524 = vsel %vm523, %v516, %v520
        %v525 = vand.u32 2147483647, %v509
        %vm526 = vcmp.eq.f32.partialorder %v525, 8.507059e+37
        %v527 = vand.u32 %v509, 2147483648
        %v528 = vor.u32 1.1754944e-38, %v527
        %v529 = vsel %vm526, %v528, %v524
        %v530 = vrcp.pop %v515
        %v531 = vmul.f32 %v515, %v530
        %v532 = vsub.f32 1.0, %v531
        %v533 = vmul.f32 %v530, %v532
        %v534 = vadd.f32 %v530, %v533
        %vm535 = vweird.f32 %v515
        %vm536 = vweird.f32 %v530
        %vm537 = vmor %vm535, %vm536
        %v538 = vsel %vm537, %v530, %v534
        %v539 = vand.u32 2147483647, %v515
        %vm540 = vcmp.eq.f32.partialorder %v539, 8.507059e+37
        %v541 = vand.u32 %v515, 2147483648
        %v542 = vor.u32 1.1754944e-38, %v541
        %v543 = vsel %vm540, %v542, %v538
        %v544 = vmul.f32 %v501, %v529
        %v545 = vmul.f32 %v503, %v543
        %546 = vmatpush.xpose.msra.mxu0 0.0
        %547 = vmatpush.xpose.msra.mxu0 0.0
        %548 = vmatpush.xpose.msra.mxu0 0.0
        %549 = vmatpush.xpose.msra.mxu0 0.0
        %550 = vmatpush.xpose.msra.mxu0 0.0
        %551 = vmatpush.xpose.msra.mxu0 0.0
        %552 = vmatpush.xpose.msra.mxu0 0.0
        %553 = vmatpush.xpose.msra.mxu0 0.0
        %554 = vmatpush.xpose.msra.mxu0 0.0
        %555 = vmatpush.xpose.msra.mxu0 0.0
        %556 = vmatpush.xpose.msra.mxu0 0.0
        %557 = vmatpush.xpose.msra.mxu0 0.0
        %558 = vmatpush.xpose.msra.mxu0 0.0
        %559 = vmatpush.xpose.msra.mxu0 0.0
        %560 = vmatpush.xpose.msra.mxu0 0.0
        %561 = vmatpush.xpose.msra.mxu0 %v394
        %562 = vmatmul.f32.gmra.mxu0 %v484
        %v563 = vpop.f32.mrf.mxu0
        %v564 = vadd.f32 0.0, %v563
        %565 = vdwg.mxu0
        %566 = vmatpush.xpose.msra.mxu0 0.0
        %567 = vmatpush.xpose.msra.mxu0 0.0
        %568 = vmatpush.xpose.msra.mxu0 0.0
        %569 = vmatpush.xpose.msra.mxu0 0.0
        %570 = vmatpush.xpose.msra.mxu0 0.0
        %571 = vmatpush.xpose.msra.mxu0 0.0
        %572 = vmatpush.xpose.msra.mxu0 0.0
        %573 = vmatpush.xpose.msra.mxu0 0.0
        %574 = vmatpush.xpose.msra.mxu0 0.0
        %575 = vmatpush.xpose.msra.mxu0 0.0
        %576 = vmatpush.xpose.msra.mxu0 0.0
        %577 = vmatpush.xpose.msra.mxu0 0.0
        %578 = vmatpush.xpose.msra.mxu0 0.0
        %579 = vmatpush.xpose.msra.mxu0 0.0
        %580 = vmatpush.xpose.msra.mxu0 0.0
        %581 = vmatpush.xpose.msra.mxu0 %v447
        %582 = vmatmul.f32.gmra.mxu0 %v485
        %v583 = vpop.f32.mrf.mxu0
        %v584 = vadd.f32 %v564, %v583
        %585 = vdwg.mxu0
        %586 = vxpose.xlu0.b32.start [1/16] %v584, 128
        %587 = vxpose.xlu0.b32.cont [2/16] 0.0, 128
        %588 = vxpose.xlu0.b32.cont [3/16] 0.0, 128
        %589 = vxpose.xlu0.b32.cont [4/16] 0.0, 128
        %590 = vxpose.xlu0.b32.cont [5/16] 0.0, 128
        %591 = vxpose.xlu0.b32.cont [6/16] 0.0, 128
        %592 = vxpose.xlu0.b32.cont [7/16] 0.0, 128
        %593 = vxpose.xlu0.b32.cont [8/16] 0.0, 128
        %594 = vxpose.xlu0.b32.cont [9/16] 0.0, 128
        %595 = vxpose.xlu0.b32.cont [10/16] 0.0, 128
        %596 = vxpose.xlu0.b32.cont [11/16] 0.0, 128
        %597 = vxpose.xlu0.b32.cont [12/16] 0.0, 128
        %598 = vxpose.xlu0.b32.cont [13/16] 0.0, 128
        %599 = vxpose.xlu0.b32.cont [14/16] 0.0, 128
        %600 = vxpose.xlu0.b32.cont [15/16] 0.0, 128
        %601 = vxpose.xlu0.b32.end [16/16] 0.0, 128
        %v602 = vpop.trf.xlu0
        %v603 = vpop.trf.xlu0
        %v604 = vpop.trf.xlu0
        %v605 = vpop.trf.xlu0
        %v606 = vpop.trf.xlu0
        %v607 = vpop.trf.xlu0
        %v608 = vpop.trf.xlu0
        %v609 = vpop.trf.xlu0
        %v610 = vpop.trf.xlu0
        %v611 = vpop.trf.xlu0
        %v612 = vpop.trf.xlu0
        %v613 = vpop.trf.xlu0
        %v614 = vpop.trf.xlu0
        %v615 = vpop.trf.xlu0
        %v616 = vpop.trf.xlu0
        %v617 = vpop.trf.xlu0
        %vm618 = vcmask 64512
        %v620 = vsel %vm618, %v602, 0
        %622 = vmatpush.msra.mxu0 0.0
        %623 = vmatpush.msra.mxu0 0.0
        %624 = vmatpush.msra.mxu0 0.0
        %625 = vmatpush.msra.mxu0 0.0
        %626 = vmatpush.msra.mxu0 0.0
        %627 = vmatpush.msra.mxu0 0.0
        %628 = vmatpush.msra.mxu0 0.0
        %629 = vmatpush.msra.mxu0 0.0
        %630 = vmatpush.msra.mxu0 0.0
        %631 = vmatpush.msra.mxu0 0.0
        %632 = vmatpush.msra.mxu0 0.0
        %633 = vmatpush.msra.mxu0 0.0
        %634 = vmatpush.msra.mxu0 0.0
        %635 = vmatpush.msra.mxu0 0.0
        %636 = vmatpush.msra.mxu0 0.0
        %637 = vmatpush.msra.mxu0 %v544
        %638 = vmatmul.f32.gmra.mxu0 %v620
        %v639 = vpop.f32.mrf.mxu0
        %v640 = vadd.f32 0.0, %v639
        %641 = vdwg.mxu0
        %642 = vmatpush.msra.mxu0 0.0
        %643 = vmatpush.msra.mxu0 0.0
        %644 = vmatpush.msra.mxu0 0.0
        %645 = vmatpush.msra.mxu0 0.0
        %646 = vmatpush.msra.mxu0 0.0
        %647 = vmatpush.msra.mxu0 0.0
        %648 = vmatpush.msra.mxu0 0.0
        %649 = vmatpush.msra.mxu0 0.0
        %650 = vmatpush.msra.mxu0 0.0
        %651 = vmatpush.msra.mxu0 0.0
        %652 = vmatpush.msra.mxu0 0.0
        %653 = vmatpush.msra.mxu0 0.0
        %654 = vmatpush.msra.mxu0 0.0
        %655 = vmatpush.msra.mxu0 0.0
        %656 = vmatpush.msra.mxu0 0.0
        %657 = vmatpush.msra.mxu0 %v545
        %658 = vmatmul.f32.gmra.mxu0 %v620
        %v659 = vpop.f32.mrf.mxu0
        %v660 = vadd.f32 0.0, %v659
        %661 = vdwg.mxu0
        %v662 = vmax.f32 %v373, %v426
        %663 = vmax.xlane.f32.xlu0 %v662
        %v664 = vpop.xlane.xlu0 %663
        %v665 = vsub.f32 %v373, %v664
        %v666 = vsub.f32 %v426, %v664
        %v667 = vmul.f32 %v665, 1.442695
        %v668 = vpow.pop %v667
        %v669 = vmul.f32 %v666, 1.442695
        %v670 = vpow.pop %v669
        %v671 = vadd.f32 %v668, %v670
        %672 = vadd.xlane.f32.xlu0 %v671
        %v673 = vpop.xlane.xlu0 %672
        %v674 = vrcp.pop %v673
        %v675 = vmul.f32 %v673, %v674
        %v676 = vsub.f32 1.0, %v675
        %v677 = vmul.f32 %v674, %v676
        %v678 = vadd.f32 %v674, %v677
        %vm679 = vweird.f32 %v673
        %vm680 = vweird.f32 %v674
        %vm681 = vmor %vm679, %vm680
        %v682 = vsel %vm681, %v674, %v678
        %v683 = vand.u32 2147483647, %v673
        %vm684 = vcmp.eq.f32.partialorder %v683, 8.507059e+37
        %v685 = vand.u32 %v673, 2147483648
        %v686 = vor.u32 1.1754944e-38, %v685
        %v687 = vsel %vm684, %v686, %v682
        %v688 = vmul.f32 %v668, %v687
        %v689 = vmul.f32 %v670, %v687
        %v690 = vrot.slane %v385, 4
        %v691 = vmax.f32 %v385, %v690
        %v692 = vrot.slane %v691, 2
        %v693 = vmax.f32 %v691, %v692
        %v694 = vrot.slane %v693, 1
        %v695 = vmax.f32 %v693, %v694
        %v696 = vrot.slane %v438, 4
        %v697 = vmax.f32 %v438, %v696
        %v698 = vrot.slane %v697, 2
        %v699 = vmax.f32 %v697, %v698
        %v700 = vrot.slane %v699, 1
        %v701 = vmax.f32 %v699, %v700
        %v702 = vsub.f32 %v385, %v695
        %v703 = vsub.f32 %v438, %v701
        %v704 = vmul.f32 %v702, 1.442695
        %v705 = vpow.pop %v704
        %v706 = vmul.f32 %v703, 1.442695
        %v707 = vpow.pop %v706
        %v708 = vrot.slane %v705, 4
        %v709 = vadd.f32 %v705, %v708
        %v710 = vrot.slane %v709, 2
        %v711 = vadd.f32 %v709, %v710
        %v712 = vrot.slane %v711, 1
        %v713 = vadd.f32 %v711, %v712
        %v714 = vrot.slane %v707, 4
        %v715 = vadd.f32 %v707, %v714
        %v716 = vrot.slane %v715, 2
        %v717 = vadd.f32 %v715, %v716
        %v718 = vrot.slane %v717, 1
        %v719 = vadd.f32 %v717, %v718
        %v720 = vrcp.pop %v713
        %v721 = vmul.f32 %v713, %v720
        %v722 = vsub.f32 1.0, %v721
        %v723 = vmul.f32 %v720, %v722
        %v724 = vadd.f32 %v720, %v723
        %vm725 = vweird.f32 %v713
        %vm726 = vweird.f32 %v720
        %vm727 = vmor %vm725, %vm726
        %v728 = vsel %vm727, %v720, %v724
        %v729 = vand.u32 2147483647, %v713
        %vm730 = vcmp.eq.f32.partialorder %v729, 8.507059e+37
        %v731 = vand.u32 %v713, 2147483648
        %v732 = vor.u32 1.1754944e-38, %v731
        %v733 = vsel %vm730, %v732, %v728
        %v734 = vrcp.pop %v719
        %v735 = vmul.f32 %v719, %v734
        %v736 = vsub.f32 1.0, %v735
        %v737 = vmul.f32 %v734, %v736
        %v738 = vadd.f32 %v734, %v737
        %vm739 = vweird.f32 %v719
        %vm740 = vweird.f32 %v734
        %vm741 = vmor %vm739, %vm740
        %v742 = vsel %vm741, %v734, %v738
        %v743 = vand.u32 2147483647, %v719
        %vm744 = vcmp.eq.f32.partialorder %v743, 8.507059e+37
        %v745 = vand.u32 %v719, 2147483648
        %v746 = vor.u32 1.1754944e-38, %v745
        %v747 = vsel %vm744, %v746, %v742
        %v748 = vmul.f32 %v705, %v733
        %v749 = vmul.f32 %v707, %v747
        %750 = vmatpush.xpose.msra.mxu0 0.0
        %751 = vmatpush.xpose.msra.mxu0 0.0
        %752 = vmatpush.xpose.msra.mxu0 0.0
        %753 = vmatpush.xpose.msra.mxu0 0.0
        %754 = vmatpush.xpose.msra.mxu0 0.0
        %755 = vmatpush.xpose.msra.mxu0 0.0
        %756 = vmatpush.xpose.msra.mxu0 0.0
        %757 = vmatpush.xpose.msra.mxu0 0.0
        %758 = vmatpush.xpose.msra.mxu0 0.0
        %759 = vmatpush.xpose.msra.mxu0 0.0
        %760 = vmatpush.xpose.msra.mxu0 0.0
        %761 = vmatpush.xpose.msra.mxu0 0.0
        %762 = vmatpush.xpose.msra.mxu0 0.0
        %763 = vmatpush.xpose.msra.mxu0 0.0
        %764 = vmatpush.xpose.msra.mxu0 0.0
        %765 = vmatpush.xpose.msra.mxu0 %v397
        %766 = vmatmul.f32.gmra.mxu0 %v688
        %v767 = vpop.f32.mrf.mxu0
        %v768 = vadd.f32 0.0, %v767
        %769 = vdwg.mxu0
        %770 = vmatpush.xpose.msra.mxu0 0.0
        %771 = vmatpush.xpose.msra.mxu0 0.0
        %772 = vmatpush.xpose.msra.mxu0 0.0
        %773 = vmatpush.xpose.msra.mxu0 0.0
        %774 = vmatpush.xpose.msra.mxu0 0.0
        %775 = vmatpush.xpose.msra.mxu0 0.0
        %776 = vmatpush.xpose.msra.mxu0 0.0
        %777 = vmatpush.xpose.msra.mxu0 0.0
        %778 = vmatpush.xpose.msra.mxu0 0.0
        %779 = vmatpush.xpose.msra.mxu0 0.0
        %780 = vmatpush.xpose.msra.mxu0 0.0
        %781 = vmatpush.xpose.msra.mxu0 0.0
        %782 = vmatpush.xpose.msra.mxu0 0.0
        %783 = vmatpush.xpose.msra.mxu0 0.0
        %784 = vmatpush.xpose.msra.mxu0 0.0
        %785 = vmatpush.xpose.msra.mxu0 %v450
        %786 = vmatmul.f32.gmra.mxu0 %v689
        %v787 = vpop.f32.mrf.mxu0
        %v788 = vadd.f32 %v768, %v787
        %789 = vdwg.mxu0
        %790 = vxpose.xlu0.b32.start [1/16] %v788, 128
        %791 = vxpose.xlu0.b32.cont [2/16] 0.0, 128
        %792 = vxpose.xlu0.b32.cont [3/16] 0.0, 128
        %793 = vxpose.xlu0.b32.cont [4/16] 0.0, 128
        %794 = vxpose.xlu0.b32.cont [5/16] 0.0, 128
        %795 = vxpose.xlu0.b32.cont [6/16] 0.0, 128
        %796 = vxpose.xlu0.b32.cont [7/16] 0.0, 128
        %797 = vxpose.xlu0.b32.cont [8/16] 0.0, 128
        %798 = vxpose.xlu0.b32.cont [9/16] 0.0, 128
        %799 = vxpose.xlu0.b32.cont [10/16] 0.0, 128
        %800 = vxpose.xlu0.b32.cont [11/16] 0.0, 128
        %801 = vxpose.xlu0.b32.cont [12/16] 0.0, 128
        %802 = vxpose.xlu0.b32.cont [13/16] 0.0, 128
        %803 = vxpose.xlu0.b32.cont [14/16] 0.0, 128
        %804 = vxpose.xlu0.b32.cont [15/16] 0.0, 128
        %805 = vxpose.xlu0.b32.end [16/16] 0.0, 128
        %v806 = vpop.trf.xlu0
        %v807 = vpop.trf.xlu0
        %v808 = vpop.trf.xlu0
        %v809 = vpop.trf.xlu0
        %v810 = vpop.trf.xlu0
        %v811 = vpop.trf.xlu0
        %v812 = vpop.trf.xlu0
        %v813 = vpop.trf.xlu0
        %v814 = vpop.trf.xlu0
        %v815 = vpop.trf.xlu0
        %v816 = vpop.trf.xlu0
        %v817 = vpop.trf.xlu0
        %v818 = vpop.trf.xlu0
        %v819 = vpop.trf.xlu0
        %v820 = vpop.trf.xlu0
        %v821 = vpop.trf.xlu0
        %v823 = vsel %vm618, %v806, 0
        %825 = vmatpush.msra.mxu0 0.0
        %826 = vmatpush.msra.mxu0 0.0
        %827 = vmatpush.msra.mxu0 0.0
        %828 = vmatpush.msra.mxu0 0.0
        %829 = vmatpush.msra.mxu0 0.0
        %830 = vmatpush.msra.mxu0 0.0
        %831 = vmatpush.msra.mxu0 0.0
        %832 = vmatpush.msra.mxu0 0.0
        %833 = vmatpush.msra.mxu0 0.0
        %834 = vmatpush.msra.mxu0 0.0
        %835 = vmatpush.msra.mxu0 0.0
        %836 = vmatpush.msra.mxu0 0.0
        %837 = vmatpush.msra.mxu0 0.0
        %838 = vmatpush.msra.mxu0 0.0
        %839 = vmatpush.msra.mxu0 0.0
        %840 = vmatpush.msra.mxu0 %v748
        %841 = vmatmul.f32.gmra.mxu0 %v823
        %v842 = vpop.f32.mrf.mxu0
        %v843 = vadd.f32 0.0, %v842
        %844 = vdwg.mxu0
        %845 = vmatpush.msra.mxu0 0.0
        %846 = vmatpush.msra.mxu0 0.0
        %847 = vmatpush.msra.mxu0 0.0
        %848 = vmatpush.msra.mxu0 0.0
        %849 = vmatpush.msra.mxu0 0.0
        %850 = vmatpush.msra.mxu0 0.0
        %851 = vmatpush.msra.mxu0 0.0
        %852 = vmatpush.msra.mxu0 0.0
        %853 = vmatpush.msra.mxu0 0.0
        %854 = vmatpush.msra.mxu0 0.0
        %855 = vmatpush.msra.mxu0 0.0
        %856 = vmatpush.msra.mxu0 0.0
        %857 = vmatpush.msra.mxu0 0.0
        %858 = vmatpush.msra.mxu0 0.0
        %859 = vmatpush.msra.mxu0 0.0
        %860 = vmatpush.msra.mxu0 %v749
        %861 = vmatmul.f32.gmra.mxu0 %v823
        %v862 = vpop.f32.mrf.mxu0
        %v863 = vadd.f32 0.0, %v862
        %864 = vdwg.mxu0
        %v865 = vmax.f32 %v376, %v429
        %866 = vmax.xlane.f32.xlu0 %v865
        %v867 = vpop.xlane.xlu0 %866
        %v868 = vsub.f32 %v376, %v867
        %v869 = vsub.f32 %v429, %v867
        %v870 = vmul.f32 %v868, 1.442695
        %v871 = vpow.pop %v870
        %v872 = vmul.f32 %v869, 1.442695
        %v873 = vpow.pop %v872
        %v874 = vadd.f32 %v871, %v873
        %875 = vadd.xlane.f32.xlu0 %v874
        %v876 = vpop.xlane.xlu0 %875
        %v877 = vrcp.pop %v876
        %v878 = vmul.f32 %v876, %v877
        %v879 = vsub.f32 1.0, %v878
        %v880 = vmul.f32 %v877, %v879
        %v881 = vadd.f32 %v877, %v880
        %vm882 = vweird.f32 %v876
        %vm883 = vweird.f32 %v877
        %vm884 = vmor %vm882, %vm883
        %v885 = vsel %vm884, %v877, %v881
        %v886 = vand.u32 2147483647, %v876
        %vm887 = vcmp.eq.f32.partialorder %v886, 8.507059e+37
        %v888 = vand.u32 %v876, 2147483648
        %v889 = vor.u32 1.1754944e-38, %v888
        %v890 = vsel %vm887, %v889, %v885
        %v891 = vmul.f32 %v871, %v890
        %v892 = vmul.f32 %v873, %v890
        %v893 = vrot.slane %v388, 4
        %v894 = vmax.f32 %v388, %v893
        %v895 = vrot.slane %v894, 2
        %v896 = vmax.f32 %v894, %v895
        %v897 = vrot.slane %v896, 1
        %v898 = vmax.f32 %v896, %v897
        %v899 = vrot.slane %v441, 4
        %v900 = vmax.f32 %v441, %v899
        %v901 = vrot.slane %v900, 2
        %v902 = vmax.f32 %v900, %v901
        %v903 = vrot.slane %v902, 1
        %v904 = vmax.f32 %v902, %v903
        %v905 = vsub.f32 %v388, %v898
        %v906 = vsub.f32 %v441, %v904
        %v907 = vmul.f32 %v905, 1.442695
        %v908 = vpow.pop %v907
        %v909 = vmul.f32 %v906, 1.442695
        %v910 = vpow.pop %v909
        %v911 = vrot.slane %v908, 4
        %v912 = vadd.f32 %v908, %v911
        %v913 = vrot.slane %v912, 2
        %v914 = vadd.f32 %v912, %v913
        %v915 = vrot.slane %v914, 1
        %v916 = vadd.f32 %v914, %v915
        %v917 = vrot.slane %v910, 4
        %v918 = vadd.f32 %v910, %v917
        %v919 = vrot.slane %v918, 2
        %v920 = vadd.f32 %v918, %v919
        %v921 = vrot.slane %v920, 1
        %v922 = vadd.f32 %v920, %v921
        %v923 = vrcp.pop %v916
        %v924 = vmul.f32 %v916, %v923
        %v925 = vsub.f32 1.0, %v924
        %v926 = vmul.f32 %v923, %v925
        %v927 = vadd.f32 %v923, %v926
        %vm928 = vweird.f32 %v916
        %vm929 = vweird.f32 %v923
        %vm930 = vmor %vm928, %vm929
        %v931 = vsel %vm930, %v923, %v927
        %v932 = vand.u32 2147483647, %v916
        %vm933 = vcmp.eq.f32.partialorder %v932, 8.507059e+37
        %v934 = vand.u32 %v916, 2147483648
        %v935 = vor.u32 1.1754944e-38, %v934
        %v936 = vsel %vm933, %v935, %v931
        %v937 = vrcp.pop %v922
        %v938 = vmul.f32 %v922, %v937
        %v939 = vsub.f32 1.0, %v938
        %v940 = vmul.f32 %v937, %v939
        %v941 = vadd.f32 %v937, %v940
        %vm942 = vweird.f32 %v922
        %vm943 = vweird.f32 %v937
        %vm944 = vmor %vm942, %vm943
        %v945 = vsel %vm944, %v937, %v941
        %v946 = vand.u32 2147483647, %v922
        %vm947 = vcmp.eq.f32.partialorder %v946, 8.507059e+37
        %v948 = vand.u32 %v922, 2147483648
        %v949 = vor.u32 1.1754944e-38, %v948
        %v950 = vsel %vm947, %v949, %v945
        %v951 = vmul.f32 %v908, %v936
        %v952 = vmul.f32 %v910, %v950
        %953 = vmatpush.xpose.msra.mxu0 0.0
        %954 = vmatpush.xpose.msra.mxu0 0.0
        %955 = vmatpush.xpose.msra.mxu0 0.0
        %956 = vmatpush.xpose.msra.mxu0 0.0
        %957 = vmatpush.xpose.msra.mxu0 0.0
        %958 = vmatpush.xpose.msra.mxu0 0.0
        %959 = vmatpush.xpose.msra.mxu0 0.0
        %960 = vmatpush.xpose.msra.mxu0 0.0
        %961 = vmatpush.xpose.msra.mxu0 0.0
        %962 = vmatpush.xpose.msra.mxu0 0.0
        %963 = vmatpush.xpose.msra.mxu0 0.0
        %964 = vmatpush.xpose.msra.mxu0 0.0
        %965 = vmatpush.xpose.msra.mxu0 0.0
        %966 = vmatpush.xpose.msra.mxu0 0.0
        %967 = vmatpush.xpose.msra.mxu0 0.0
        %968 = vmatpush.xpose.msra.mxu0 %v400
        %969 = vmatmul.f32.gmra.mxu0 %v891
        %v970 = vpop.f32.mrf.mxu0
        %v971 = vadd.f32 0.0, %v970
        %972 = vdwg.mxu0
        %973 = vmatpush.xpose.msra.mxu0 0.0
        %974 = vmatpush.xpose.msra.mxu0 0.0
        %975 = vmatpush.xpose.msra.mxu0 0.0
        %976 = vmatpush.xpose.msra.mxu0 0.0
        %977 = vmatpush.xpose.msra.mxu0 0.0
        %978 = vmatpush.xpose.msra.mxu0 0.0
        %979 = vmatpush.xpose.msra.mxu0 0.0
        %980 = vmatpush.xpose.msra.mxu0 0.0
        %981 = vmatpush.xpose.msra.mxu0 0.0
        %982 = vmatpush.xpose.msra.mxu0 0.0
        %983 = vmatpush.xpose.msra.mxu0 0.0
        %984 = vmatpush.xpose.msra.mxu0 0.0
        %985 = vmatpush.xpose.msra.mxu0 0.0
        %986 = vmatpush.xpose.msra.mxu0 0.0
        %987 = vmatpush.xpose.msra.mxu0 0.0
        %988 = vmatpush.xpose.msra.mxu0 %v453
        %989 = vmatmul.f32.gmra.mxu0 %v892
        %v990 = vpop.f32.mrf.mxu0
        %v991 = vadd.f32 %v971, %v990
        %992 = vdwg.mxu0
        %993 = vxpose.xlu0.b32.start [1/16] %v991, 128
        %994 = vxpose.xlu0.b32.cont [2/16] 0.0, 128
        %995 = vxpose.xlu0.b32.cont [3/16] 0.0, 128
        %996 = vxpose.xlu0.b32.cont [4/16] 0.0, 128
        %997 = vxpose.xlu0.b32.cont [5/16] 0.0, 128
        %998 = vxpose.xlu0.b32.cont [6/16] 0.0, 128
        %999 = vxpose.xlu0.b32.cont [7/16] 0.0, 128
        %1000 = vxpose.xlu0.b32.cont [8/16] 0.0, 128
        %1001 = vxpose.xlu0.b32.cont [9/16] 0.0, 128
        %1002 = vxpose.xlu0.b32.cont [10/16] 0.0, 128
        %1003 = vxpose.xlu0.b32.cont [11/16] 0.0, 128
        %1004 = vxpose.xlu0.b32.cont [12/16] 0.0, 128
        %1005 = vxpose.xlu0.b32.cont [13/16] 0.0, 128
        %1006 = vxpose.xlu0.b32.cont [14/16] 0.0, 128
        %1007 = vxpose.xlu0.b32.cont [15/16] 0.0, 128
        %1008 = vxpose.xlu0.b32.end [16/16] 0.0, 128
        %v1009 = vpop.trf.xlu0
        %v1010 = vpop.trf.xlu0
        %v1011 = vpop.trf.xlu0
        %v1012 = vpop.trf.xlu0
        %v1013 = vpop.trf.xlu0
        %v1014 = vpop.trf.xlu0
        %v1015 = vpop.trf.xlu0
        %v1016 = vpop.trf.xlu0
        %v1017 = vpop.trf.xlu0
        %v1018 = vpop.trf.xlu0
        %v1019 = vpop.trf.xlu0
        %v1020 = vpop.trf.xlu0
        %v1021 = vpop.trf.xlu0
        %v1022 = vpop.trf.xlu0
        %v1023 = vpop.trf.xlu0
        %v1024 = vpop.trf.xlu0
        %v1026 = vsel %vm618, %v1009, 0
        %1028 = vmatpush.msra.mxu0 0.0
        %1029 = vmatpush.msra.mxu0 0.0
        %1030 = vmatpush.msra.mxu0 0.0
        %1031 = vmatpush.msra.mxu0 0.0
        %1032 = vmatpush.msra.mxu0 0.0
        %1033 = vmatpush.msra.mxu0 0.0
        %1034 = vmatpush.msra.mxu0 0.0
        %1035 = vmatpush.msra.mxu0 0.0
        %1036 = vmatpush.msra.mxu0 0.0
        %1037 = vmatpush.msra.mxu0 0.0
        %1038 = vmatpush.msra.mxu0 0.0
        %1039 = vmatpush.msra.mxu0 0.0
        %1040 = vmatpush.msra.mxu0 0.0
        %1041 = vmatpush.msra.mxu0 0.0
        %1042 = vmatpush.msra.mxu0 0.0
        %1043 = vmatpush.msra.mxu0 %v951
        %1044 = vmatmul.f32.gmra.mxu0 %v1026
        %v1045 = vpop.f32.mrf.mxu0
        %v1046 = vadd.f32 0.0, %v1045
        %1047 = vdwg.mxu0
        %1048 = vmatpush.msra.mxu0 0.0
        %1049 = vmatpush.msra.mxu0 0.0
        %1050 = vmatpush.msra.mxu0 0.0
        %1051 = vmatpush.msra.mxu0 0.0
        %1052 = vmatpush.msra.mxu0 0.0
        %1053 = vmatpush.msra.mxu0 0.0
        %1054 = vmatpush.msra.mxu0 0.0
        %1055 = vmatpush.msra.mxu0 0.0
        %1056 = vmatpush.msra.mxu0 0.0
        %1057 = vmatpush.msra.mxu0 0.0
        %1058 = vmatpush.msra.mxu0 0.0
        %1059 = vmatpush.msra.mxu0 0.0
        %1060 = vmatpush.msra.mxu0 0.0
        %1061 = vmatpush.msra.mxu0 0.0
        %1062 = vmatpush.msra.mxu0 0.0
        %1063 = vmatpush.msra.mxu0 %v952
        %1064 = vmatmul.f32.gmra.mxu0 %v1026
        %v1065 = vpop.f32.mrf.mxu0
        %v1066 = vadd.f32 0.0, %v1065
        %1067 = vdwg.mxu0
        %v1068 = vmax.f32 %v379, %v432
        %1069 = vmax.xlane.f32.xlu0 %v1068
        %v1070 = vpop.xlane.xlu0 %1069
        %v1071 = vsub.f32 %v379, %v1070
        %v1072 = vsub.f32 %v432, %v1070
        %v1073 = vmul.f32 %v1071, 1.442695
        %v1074 = vpow.pop %v1073
        %v1075 = vmul.f32 %v1072, 1.442695
        %v1076 = vpow.pop %v1075
        %v1077 = vadd.f32 %v1074, %v1076
        %1078 = vadd.xlane.f32.xlu0 %v1077
        %v1079 = vpop.xlane.xlu0 %1078
        %v1080 = vrcp.pop %v1079
        %v1081 = vmul.f32 %v1079, %v1080
        %v1082 = vsub.f32 1.0, %v1081
        %v1083 = vmul.f32 %v1080, %v1082
        %v1084 = vadd.f32 %v1080, %v1083
        %vm1085 = vweird.f32 %v1079
        %vm1086 = vweird.f32 %v1080
        %vm1087 = vmor %vm1085, %vm1086
        %v1088 = vsel %vm1087, %v1080, %v1084
        %v1089 = vand.u32 2147483647, %v1079
        %vm1090 = vcmp.eq.f32.partialorder %v1089, 8.507059e+37
        %v1091 = vand.u32 %v1079, 2147483648
        %v1092 = vor.u32 1.1754944e-38, %v1091
        %v1093 = vsel %vm1090, %v1092, %v1088
        %v1094 = vmul.f32 %v1074, %v1093
        %v1095 = vmul.f32 %v1076, %v1093
        %v1096 = vrot.slane %v391, 4
        %v1097 = vmax.f32 %v391, %v1096
        %v1098 = vrot.slane %v1097, 2
        %v1099 = vmax.f32 %v1097, %v1098
        %v1100 = vrot.slane %v1099, 1
        %v1101 = vmax.f32 %v1099, %v1100
        %v1102 = vrot.slane %v444, 4
        %v1103 = vmax.f32 %v444, %v1102
        %v1104 = vrot.slane %v1103, 2
        %v1105 = vmax.f32 %v1103, %v1104
        %v1106 = vrot.slane %v1105, 1
        %v1107 = vmax.f32 %v1105, %v1106
        %v1108 = vsub.f32 %v391, %v1101
        %v1109 = vsub.f32 %v444, %v1107
        %v1110 = vmul.f32 %v1108, 1.442695
        %v1111 = vpow.pop %v1110
        %v1112 = vmul.f32 %v1109, 1.442695
        %v1113 = vpow.pop %v1112
        %v1114 = vrot.slane %v1111, 4
        %v1115 = vadd.f32 %v1111, %v1114
        %v1116 = vrot.slane %v1115, 2
        %v1117 = vadd.f32 %v1115, %v1116
        %v1118 = vrot.slane %v1117, 1
        %v1119 = vadd.f32 %v1117, %v1118
        %v1120 = vrot.slane %v1113, 4
        %v1121 = vadd.f32 %v1113, %v1120
        %v1122 = vrot.slane %v1121, 2
        %v1123 = vadd.f32 %v1121, %v1122
        %v1124 = vrot.slane %v1123, 1
        %v1125 = vadd.f32 %v1123, %v1124
        %v1126 = vrcp.pop %v1119
        %v1127 = vmul.f32 %v1119, %v1126
        %v1128 = vsub.f32 1.0, %v1127
        %v1129 = vmul.f32 %v1126, %v1128
        %v1130 = vadd.f32 %v1126, %v1129
        %vm1131 = vweird.f32 %v1119
        %vm1132 = vweird.f32 %v1126
        %vm1133 = vmor %vm1131, %vm1132
        %v1134 = vsel %vm1133, %v1126, %v1130
        %v1135 = vand.u32 2147483647, %v1119
        %vm1136 = vcmp.eq.f32.partialorder %v1135, 8.507059e+37
        %v1137 = vand.u32 %v1119, 2147483648
        %v1138 = vor.u32 1.1754944e-38, %v1137
        %v1139 = vsel %vm1136, %v1138, %v1134
        %v1140 = vrcp.pop %v1125
        %v1141 = vmul.f32 %v1125, %v1140
        %v1142 = vsub.f32 1.0, %v1141
        %v1143 = vmul.f32 %v1140, %v1142
        %v1144 = vadd.f32 %v1140, %v1143
        %vm1145 = vweird.f32 %v1125
        %vm1146 = vweird.f32 %v1140
        %vm1147 = vmor %vm1145, %vm1146
        %v1148 = vsel %vm1147, %v1140, %v1144
        %v1149 = vand.u32 2147483647, %v1125
        %vm1150 = vcmp.eq.f32.partialorder %v1149, 8.507059e+37
        %v1151 = vand.u32 %v1125, 2147483648
        %v1152 = vor.u32 1.1754944e-38, %v1151
        %v1153 = vsel %vm1150, %v1152, %v1148
        %v1154 = vmul.f32 %v1111, %v1139
        %v1155 = vmul.f32 %v1113, %v1153
        %1156 = vmatpush.xpose.msra.mxu0 0.0
        %1157 = vmatpush.xpose.msra.mxu0 0.0
        %1158 = vmatpush.xpose.msra.mxu0 0.0
        %1159 = vmatpush.xpose.msra.mxu0 0.0
        %1160 = vmatpush.xpose.msra.mxu0 0.0
        %1161 = vmatpush.xpose.msra.mxu0 0.0
        %1162 = vmatpush.xpose.msra.mxu0 0.0
        %1163 = vmatpush.xpose.msra.mxu0 0.0
        %1164 = vmatpush.xpose.msra.mxu0 0.0
        %1165 = vmatpush.xpose.msra.mxu0 0.0
        %1166 = vmatpush.xpose.msra.mxu0 0.0
        %1167 = vmatpush.xpose.msra.mxu0 0.0
        %1168 = vmatpush.xpose.msra.mxu0 0.0
        %1169 = vmatpush.xpose.msra.mxu0 0.0
        %1170 = vmatpush.xpose.msra.mxu0 0.0
        %1171 = vmatpush.xpose.msra.mxu0 %v403
        %1172 = vmatmul.f32.gmra.mxu0 %v1094
        %v1173 = vpop.f32.mrf.mxu0
        %v1174 = vadd.f32 0.0, %v1173
        %1175 = vdwg.mxu0
        %1176 = vmatpush.xpose.msra.mxu0 0.0
        %1177 = vmatpush.xpose.msra.mxu0 0.0
        %1178 = vmatpush.xpose.msra.mxu0 0.0
        %1179 = vmatpush.xpose.msra.mxu0 0.0
        %1180 = vmatpush.xpose.msra.mxu0 0.0
        %1181 = vmatpush.xpose.msra.mxu0 0.0
        %1182 = vmatpush.xpose.msra.mxu0 0.0
        %1183 = vmatpush.xpose.msra.mxu0 0.0
        %1184 = vmatpush.xpose.msra.mxu0 0.0
        %1185 = vmatpush.xpose.msra.mxu0 0.0
        %1186 = vmatpush.xpose.msra.mxu0 0.0
        %1187 = vmatpush.xpose.msra.mxu0 0.0
        %1188 = vmatpush.xpose.msra.mxu0 0.0
        %1189 = vmatpush.xpose.msra.mxu0 0.0
        %1190 = vmatpush.xpose.msra.mxu0 0.0
        %1191 = vmatpush.xpose.msra.mxu0 %v456
        %1192 = vmatmul.f32.gmra.mxu0 %v1095
        %v1193 = vpop.f32.mrf.mxu0
        %v1194 = vadd.f32 %v1174, %v1193
        %1195 = vdwg.mxu0
        %1196 = vxpose.xlu0.b32.start [1/16] %v1194, 128
        %1197 = vxpose.xlu0.b32.cont [2/16] 0.0, 128
        %1198 = vxpose.xlu0.b32.cont [3/16] 0.0, 128
        %1199 = vxpose.xlu0.b32.cont [4/16] 0.0, 128
        %1200 = vxpose.xlu0.b32.cont [5/16] 0.0, 128
        %1201 = vxpose.xlu0.b32.cont [6/16] 0.0, 128
        %1202 = vxpose.xlu0.b32.cont [7/16] 0.0, 128
        %1203 = vxpose.xlu0.b32.cont [8/16] 0.0, 128
        %1204 = vxpose.xlu0.b32.cont [9/16] 0.0, 128
        %1205 = vxpose.xlu0.b32.cont [10/16] 0.0, 128
        %1206 = vxpose.xlu0.b32.cont [11/16] 0.0, 128
        %1207 = vxpose.xlu0.b32.cont [12/16] 0.0, 128
        %1208 = vxpose.xlu0.b32.cont [13/16] 0.0, 128
        %1209 = vxpose.xlu0.b32.cont [14/16] 0.0, 128
        %1210 = vxpose.xlu0.b32.cont [15/16] 0.0, 128
        %1211 = vxpose.xlu0.b32.end [16/16] 0.0, 128
        %v1212 = vpop.trf.xlu0
        %v1213 = vpop.trf.xlu0
        %v1214 = vpop.trf.xlu0
        %v1215 = vpop.trf.xlu0
        %v1216 = vpop.trf.xlu0
        %v1217 = vpop.trf.xlu0
        %v1218 = vpop.trf.xlu0
        %v1219 = vpop.trf.xlu0
        %v1220 = vpop.trf.xlu0
        %v1221 = vpop.trf.xlu0
        %v1222 = vpop.trf.xlu0
        %v1223 = vpop.trf.xlu0
        %v1224 = vpop.trf.xlu0
        %v1225 = vpop.trf.xlu0
        %v1226 = vpop.trf.xlu0
        %v1227 = vpop.trf.xlu0
        %v1229 = vsel %vm618, %v1212, 0
        %1231 = vmatpush.msra.mxu0 0.0
        %1232 = vmatpush.msra.mxu0 0.0
        %1233 = vmatpush.msra.mxu0 0.0
        %1234 = vmatpush.msra.mxu0 0.0
        %1235 = vmatpush.msra.mxu0 0.0
        %1236 = vmatpush.msra.mxu0 0.0
        %1237 = vmatpush.msra.mxu0 0.0
        %1238 = vmatpush.msra.mxu0 0.0
        %1239 = vmatpush.msra.mxu0 0.0
        %1240 = vmatpush.msra.mxu0 0.0
        %1241 = vmatpush.msra.mxu0 0.0
        %1242 = vmatpush.msra.mxu0 0.0
        %1243 = vmatpush.msra.mxu0 0.0
        %1244 = vmatpush.msra.mxu0 0.0
        %1245 = vmatpush.msra.mxu0 0.0
        %1246 = vmatpush.msra.mxu0 %v1154
        %1247 = vmatmul.f32.gmra.mxu0 %v1229
        %v1248 = vpop.f32.mrf.mxu0
        %v1249 = vadd.f32 0.0, %v1248
        %1250 = vdwg.mxu0
        %1251 = vmatpush.msra.mxu0 0.0
        %1252 = vmatpush.msra.mxu0 0.0
        %1253 = vmatpush.msra.mxu0 0.0
        %1254 = vmatpush.msra.mxu0 0.0
        %1255 = vmatpush.msra.mxu0 0.0
        %1256 = vmatpush.msra.mxu0 0.0
        %1257 = vmatpush.msra.mxu0 0.0
        %1258 = vmatpush.msra.mxu0 0.0
        %1259 = vmatpush.msra.mxu0 0.0
        %1260 = vmatpush.msra.mxu0 0.0
        %1261 = vmatpush.msra.mxu0 0.0
        %1262 = vmatpush.msra.mxu0 0.0
        %1263 = vmatpush.msra.mxu0 0.0
        %1264 = vmatpush.msra.mxu0 0.0
        %1265 = vmatpush.msra.mxu0 0.0
        %1266 = vmatpush.msra.mxu0 %v1155
        %1267 = vmatmul.f32.gmra.mxu0 %v1229
        %v1268 = vpop.f32.mrf.mxu0
        %v1269 = vadd.f32 0.0, %v1268
        %1270 = vdwg.mxu0
        %v1271 = vld [vmem:[%s3] sm:$0xff]
        %v1272 = vld [vmem:[%s3 + $0x8] sm:$0xff]
        %v1273 = vld [vmem:[%s3 + $0x10] sm:$0xff]
        %v1274 = vld [vmem:[%s3 + $0x18] sm:$0xff]
        %v1275 = vld [vmem:[%s4] sm:$0xff]
        %v1276 = vld [vmem:[%s4 + $0x8] sm:$0xff]
        %v1277 = vld [vmem:[%s4 + $0x10] sm:$0xff]
        %v1278 = vld [vmem:[%s4 + $0x18] sm:$0xff]
        %1280 = vset.pattern.permute.xlu0 0
        %1281 = vperm.xlu0 %1280, %v1275
        %v1282 = vpop.permute.xlu0 %1281
        %1285 = vset.pattern.permute.xlu0 0
        %1286 = vperm.xlu0 %1285, %v1276
        %v1287 = vpop.permute.xlu0 %1286
        %1290 = vset.pattern.permute.xlu0 0
        %1291 = vperm.xlu0 %1290, %v1277
        %v1292 = vpop.permute.xlu0 %1291
        %1295 = vset.pattern.permute.xlu0 0
        %1296 = vperm.xlu0 %1295, %v1278
        %v1297 = vpop.permute.xlu0 %1296
        %v1300 = vsel %vm315, %v1271, 0
        %v1303 = vsel %vm315, %v1272, 0
        %v1306 = vsel %vm315, %v1273, 0
        %v1309 = vsel %vm315, %v1274, 0
        %1311 = vmatpush.msra.mxu0 0.0
        %1312 = vmatpush.msra.mxu0 0.0
        %1313 = vmatpush.msra.mxu0 0.0
        %1314 = vmatpush.msra.mxu0 0.0
        %1315 = vmatpush.msra.mxu0 0.0
        %1316 = vmatpush.msra.mxu0 0.0
        %1317 = vmatpush.msra.mxu0 0.0
        %1318 = vmatpush.msra.mxu0 0.0
        %1319 = vmatpush.msra.mxu0 0.0
        %1320 = vmatpush.msra.mxu0 0.0
        %1321 = vmatpush.msra.mxu0 0.0
        %1322 = vmatpush.msra.mxu0 0.0
        %1323 = vmatpush.msra.mxu0 %v1249
        %1324 = vmatpush.msra.mxu0 %v1046
        %1325 = vmatpush.msra.mxu0 %v843
        %1326 = vmatpush.msra.mxu0 %v640
        %1327 = vmatmul.f32.gmra.mxu0 %v1300
        %v1328 = vpop.f32.mrf.mxu0
        %v1329 = vadd.f32 %v1282, %v1328
        %1330 = vmatmul.f32.gmra.mxu0 %v1303
        %v1331 = vpop.f32.mrf.mxu0
        %v1332 = vadd.f32 %v1287, %v1331
        %1333 = vmatmul.f32.gmra.mxu0 %v1306
        %v1334 = vpop.f32.mrf.mxu0
        %v1335 = vadd.f32 %v1292, %v1334
        %1336 = vmatmul.f32.gmra.mxu0 %v1309
        %v1337 = vpop.f32.mrf.mxu0
        %v1338 = vadd.f32 %v1297, %v1337
        %1339 = vdwg.mxu0
        %1340 = vmatpush.msra.mxu0 0.0
        %1341 = vmatpush.msra.mxu0 0.0
        %1342 = vmatpush.msra.mxu0 0.0
        %1343 = vmatpush.msra.mxu0 0.0
        %1344 = vmatpush.msra.mxu0 0.0
        %1345 = vmatpush.msra.mxu0 0.0
        %1346 = vmatpush.msra.mxu0 0.0
        %1347 = vmatpush.msra.mxu0 0.0
        %1348 = vmatpush.msra.mxu0 0.0
        %1349 = vmatpush.msra.mxu0 0.0
        %1350 = vmatpush.msra.mxu0 0.0
        %1351 = vmatpush.msra.mxu0 0.0
        %1352 = vmatpush.msra.mxu0 %v1269
        %1353 = vmatpush.msra.mxu0 %v1066
        %1354 = vmatpush.msra.mxu0 %v863
        %1355 = vmatpush.msra.mxu0 %v660
        %1356 = vmatmul.f32.gmra.mxu0 %v1300
        %v1357 = vpop.f32.mrf.mxu0
        %v1358 = vadd.f32 %v1282, %v1357
        %1359 = vmatmul.f32.gmra.mxu0 %v1303
        %v1360 = vpop.f32.mrf.mxu0
        %v1361 = vadd.f32 %v1287, %v1360
        %1362 = vmatmul.f32.gmra.mxu0 %v1306
        %v1363 = vpop.f32.mrf.mxu0
        %v1364 = vadd.f32 %v1292, %v1363
        %1365 = vmatmul.f32.gmra.mxu0 %v1309
        %v1366 = vpop.f32.mrf.mxu0
        %v1367 = vadd.f32 %v1297, %v1366
        %1368 = vdwg.mxu0
        %v1369 = vadd.f32 %v1329, %v223
        %v1370 = vadd.f32 %v1358, %v224
        %v1371 = vadd.f32 %v1332, %v225
        %v1372 = vadd.f32 %v1361, %v226
        %v1373 = vadd.f32 %v1335, %v227
        %v1374 = vadd.f32 %v1364, %v228
        %v1375 = vadd.f32 %v1338, %v229
        %v1376 = vadd.f32 %v1367, %v230
        %1377 = vst [vmem:[%s217] sm:$0xff] %v1369
        %1378 = vst [vmem:[%s217 + $0x8] sm:$0xff] %v1370
        %1379 = vst [vmem:[%s217 + $0x10] sm:$0xff] %v1371
        %1380 = vst [vmem:[%s217 + $0x18] sm:$0xff] %v1372
        %1381 = vst [vmem:[%s217 + $0x20] sm:$0xff] %v1373
        %1382 = vst [vmem:[%s217 + $0x28] sm:$0xff] %v1374
        %1383 = vst [vmem:[%s217 + $0x30] sm:$0xff] %v1375
        %1384 = vst [vmem:[%s217 + $0x38] sm:$0xff] %v1376
        %s1385 = sand.u32 %s137, 1
        %s1386 = scalar_lea.sflag [#allocation3], %s1385
        %s1387 = sand.u32 %s137, 1
        %s1388 = smul.addr %s1387, 64
        %s1389 = scalar_lea.vmem [#allocation2], %s1388
        // Predicated region
        $region41: #{tpu_custom_call.1} parent=39 // pred_check
          %p1390 = pneg %p147
        $region42: #{tpu_custom_call.1} parent=39 // pred_check_branch
          %1392 = sbr.rel (%p1390) target = $region44
        $region43: #{tpu_custom_call.1} parent=39 // pred_region
          %1394 = vsyncadd %s1386, 0
          %s1395 = smul.addr %s19, 8
          %s1396 = smul.addr %s1395, 8
          %s1397 = scalar_lea.hbm %s5, %s1396
          %s1398 = sshll.u32 %s1389, 4
          %s1399 = int_to_ptr.vmem [resolvable:$true] %s1398
          %s1400 = sshll.u32 %s1397, 4
          %s1401 = int_to_ptr.hbm [resolvable:$true] %s1400
          %1406 = dma.vmem_to_hbm [thread:$0]  %s1399, 1024, %s1401, %s1386, 256, 256, 16
        $region44: #{tpu_custom_call.1} parent=39 // pred_fallthru
          _
      $region40: #{tpu_custom_call.1} parent=5 // pred_fallthru
        _
      %p1407 = scmp.le.s32.totalorder 2, %s14
      // Predicated region
      $region45: #{tpu_custom_call.1} parent=5 // pred_check
        %p1408 = pneg %p1407
      $region46: #{tpu_custom_call.1} parent=5 // pred_check_branch
        %1410 = sbr.rel (%p1408) target = $region48
      $region47: #{tpu_custom_call.1} parent=5 // pred_region
        %s1411 = ssub.s32 %s14, 2
        // Predicated region
        $region49: #{tpu_custom_call.1} parent=47 // pred_check
          %p1412 = pneg %p153
        $region50: #{tpu_custom_call.1} parent=47 // pred_check_branch
          %1414 = sbr.rel (%p1412) target = $region52
        $region51: #{tpu_custom_call.1} parent=47 // pred_region
          %s1415 = sand.u32 %s138, 1
          %s1416 = scalar_lea.sflag [#allocation3], %s1415
          %s1417 = sand.u32 %s138, 1
          %s1418 = smul.addr %s1417, 64
          %s1419 = scalar_lea.vmem [#allocation2], %s1418
          %1421 = dma.done %s1416, 1024
        $region52: #{tpu_custom_call.1} parent=47 // pred_fallthru
          _
      $region48: #{tpu_custom_call.1} parent=5 // pred_fallthru
        _
    $region6: #{tpu_custom_call.1} parent=1 // loop_footer
      %s18 = sadd.s32 1, %s14
    $region7: #{tpu_custom_call.1} parent=1 // loop_footer_branch
      %13 = sbr.rel target = $region3
    $region8: #{tpu_custom_call.1} parent=1 // loop_exit
      _
    %1422 = vsyncpa [#allocation3], 1
    %s1423 = scalar_lea.sflag [#allocation3], 1
    %1424 = vsyncpa %s1423, 1

</llo_original>
